<compile_context>
chip_gen: v5e
topology: v5e:2x2
jax: 0.10.0
libtpu: 0.0.40
codegen_flags: <defaults>
</compile_context>

<pallas_src>
import functools

import jax
import jax.numpy as jnp
from jax.experimental import pallas as pl
from jax.experimental.pallas import tpu as pltpu

EPS = 1e-8        # module-level EPS in vn_layers.py (VNBatchNorm / VNLeakyReLU)
BN_EPS = 1e-5     # nn.BatchNorm1d default eps
_MM_PREC = jax.lax.Precision.HIGHEST   # full-f32 MXU passes (match the reference)
_APPROX_RECIP = False  # True -> EUP approximate reciprocal (free slot, ~1e-4 rel err)


def _pick_n_blk(N):
    """Lane-dense tile of the point axis: a multiple of 128 dividing N, or N."""
    if N <= 512:
        return N
    for cand in (1024, 896, 768, 640, 512, 384, 256, 128):
        if N % cand == 0:
            return cand
    return N  # TODO(synk): pad very irregular N to a multiple of 128


def _vmem_limit_bytes():
    try:
        cap = pltpu.get_tpu_info().vmem_capacity_bytes
        return int(min(96 * 1024 * 1024, cap * 3 // 4))   # 96MiB v5e/v6e, 48MiB v7x
    except Exception:
        return 48 * 1024 * 1024


def _vn_stats_kernel(x_ref, wf_ref, st_ref):
    # x_ref: (1, Cin, 3, n_blk)  wf_ref: (Cout, Cin)  st_ref: (1, 1, Cout, 2)
    wf = wf_ref[...].astype(jnp.float32)
    sq = None
    for v in range(3):                                   # static unroll over vector axis
        xv = x_ref[0, :, v, :].astype(jnp.float32)       # (Cin, n_blk)
        pv = jnp.dot(wf, xv, preferred_element_type=jnp.float32, precision=_MM_PREC)
        sq = pv * pv if sq is None else sq + pv * pv     # (Cout, n_blk)
    norm = jnp.sqrt(sq) + EPS
    s1 = jnp.sum(norm, axis=1, keepdims=True)            # (Cout, 1)
    s2 = jnp.sum(norm * norm, axis=1, keepdims=True)     # (Cout, 1)
    st_ref[0, 0, :, :] = jnp.concatenate([s1, s2], axis=1)


def _vn_apply_kernel(x_ref, wf_ref, wd_ref, a_ref, b_ref, o_ref, *,
                     apply_bn, negative_slope):
    # x_ref: (1, Cin, 3, n_blk)   wf_ref: (Cout, Cin)   wd_ref: (Cd, Cout)
    # a_ref, b_ref: (Cout, 1)     o_ref: (1, Cout, 3, n_blk)
    f32 = jnp.float32
    wf = wf_ref[...].astype(f32)
    wd = wd_ref[...].astype(f32)

    # VNLinear (MXU): p_v = W_feat @ x_v for each of the 3 vector components.
    p = []
    sq = None
    for v in range(3):
        xv = x_ref[0, :, v, :].astype(f32)                # (Cin, n_blk)
        pv = jnp.dot(wf, xv, preferred_element_type=f32, precision=_MM_PREC)
        p.append(pv)
        sq = pv * pv if sq is None else sq + pv * pv      # (Cout, n_blk)

    if apply_bn:
        # VNBatchNorm folded into a per-channel affine of 1/norm:
        #   p / norm * norm_bn == p * (a + b / norm),  a = gamma*inv_std, b = beta - a*mean
        norm = jnp.sqrt(sq) + EPS
        scale = a_ref[...] + b_ref[...] * pl.reciprocal(norm, approx=_APPROX_RECIP)
        p = [pv * scale for pv in p]

    # VNLeakyReLU: direction d_v = W_dir @ p_v (MXU), then the vector leaky-ReLU.
    d = [jnp.dot(wd, pv, preferred_element_type=f32, precision=_MM_PREC) for pv in p]
    dot = p[0] * d[0] + p[1] * d[1] + p[2] * d[2]         # (Cout, n_blk) (bcast if Cd==1)
    dsq = d[0] * d[0] + d[1] * d[1] + d[2] * d[2]         # (Cd,   n_blk)
    coef = jnp.where(dot < 0,
                     dot * pl.reciprocal(dsq + EPS, approx=_APPROX_RECIP),
                     0.0)
    one_minus_slope = 1.0 - negative_slope
    for v in range(3):
        o_ref[0, :, v, :] = (p[v] - one_minus_slope * coef * d[v]).astype(o_ref.dtype)


@functools.partial(jax.jit, static_argnames=("bn_mode", "negative_slope"))
def vn_linear_and_leaky_relu(x, w_feat, w_dir, bn_gamma, bn_beta, *,
                             bn_mode="norm", negative_slope=0.2):
    """Forward pass of VNLinearAndLeakyReLU.

    x:        [B, C_in, 3, N] (or [B, C_in, 3, N, ...]; trailing dims flattened)
    w_feat:   [C_out, C_in]   VNLinear.map_to_feat.weight
    w_dir:    [C_d, C_out]    VNLeakyReLU.map_to_dir.weight (C_d = 1 if shared)
    bn_gamma: [C_out]         BatchNorm1d.weight (ignored if bn_mode == 'none')
    bn_beta:  [C_out]         BatchNorm1d.bias   (ignored if bn_mode == 'none')
    """
    orig_shape = x.shape
    if x.ndim > 4:
        # dim=5: BatchNorm2d over (B, N, M) == BatchNorm1d over (B, N*M); the
        # flatten is contiguous -> free.
        x = x.reshape(x.shape[0], x.shape[1], 3, -1)
    B, Cin, V, N = x.shape
    assert V == 3
    Cout, Cin2 = w_feat.shape
    assert Cin2 == Cin
    Cd, Cout2 = w_dir.shape
    assert Cout2 == Cout and Cd in (1, Cout)

    n_blk = _pick_n_blk(N)
    assert N % n_blk == 0
    NT = N // n_blk
    vmem_limit = _vmem_limit_bytes()
    f32 = jnp.float32
    w_feat = w_feat.astype(f32)
    w_dir = w_dir.astype(f32)

    x_spec = pl.BlockSpec((1, Cin, 3, n_blk), lambda b, t: (b, 0, 0, t))
    wf_spec = pl.BlockSpec((Cout, Cin), lambda b, t: (0, 0))

    apply_bn = bn_mode != "none"
    if apply_bn:
        # ---- pass 1: per-(b, tile) partial sums of norm and norm^2 ------------
        partial = pl.pallas_call(
            _vn_stats_kernel,
            out_shape=jax.ShapeDtypeStruct((B, NT, Cout, 2), f32),
            grid=(B, NT),
            in_specs=[x_spec, wf_spec],
            out_specs=pl.BlockSpec((1, 1, Cout, 2), lambda b, t: (b, t, 0, 0)),
            compiler_params=pltpu.CompilerParams(
                dimension_semantics=("parallel", "parallel"),
                vmem_limit_bytes=vmem_limit),
            cost_estimate=pl.CostEstimate(
                flops=int(B * 3 * N * 2 * Cin * Cout + 6 * B * N * Cout),
                transcendentals=int(B * N * Cout),
                bytes_accessed=int(x.size * 4 + B * NT * Cout * 2 * 4)),
        )(x, w_feat)

        sums = jnp.sum(partial, axis=(0, 1))              # (Cout, 2), tiny JAX reduce
        cnt = float(B * N)
        mean = sums[:, 0] / cnt
        var = sums[:, 1] / cnt - mean * mean              # biased (training-mode) var
        a = bn_gamma.astype(f32) * jax.lax.rsqrt(var + BN_EPS)
        b = bn_beta.astype(f32) - a * mean
    else:
        a = jnp.ones((Cout,), f32)
        b = jnp.zeros((Cout,), f32)

    a2 = a.reshape(Cout, 1)
    b2 = b.reshape(Cout, 1)

    # ---- pass 2 (the only pass when bn_mode=='none'): linear + BN + leakyReLU --
    kernel = functools.partial(_vn_apply_kernel,
                               apply_bn=apply_bn,
                               negative_slope=float(negative_slope))
    out = pl.pallas_call(
        kernel,
        out_shape=jax.ShapeDtypeStruct((B, Cout, 3, N), x.dtype),
        grid=(B, NT),
        in_specs=[
            x_spec,
            wf_spec,
            pl.BlockSpec((Cd, Cout), lambda b, t: (0, 0)),
            pl.BlockSpec((Cout, 1), lambda b, t: (0, 0)),
            pl.BlockSpec((Cout, 1), lambda b, t: (0, 0)),
        ],
        out_specs=pl.BlockSpec((1, Cout, 3, n_blk), lambda b, t: (b, 0, 0, t)),
        compiler_params=pltpu.CompilerParams(
            dimension_semantics=("parallel", "parallel"),
            vmem_limit_bytes=vmem_limit),
        cost_estimate=pl.CostEstimate(
            flops=int(B * 3 * N * 2 * Cout * (Cin + Cd) + 15 * B * 3 * N * Cout),
            transcendentals=int(2 * B * N * Cout),
            bytes_accessed=int(x.size * 4 + B * Cout * 3 * N * 4)),
    )(x, w_feat, w_dir, a2, b2)

    if len(orig_shape) > 4:
        out = out.reshape(orig_shape[:1] + (Cout,) + orig_shape[2:])
    return out


def _reference(x, w_feat, w_dir, gamma, beta, *, bn_mode="norm", negative_slope=0.2):
    """Pure-JAX reference mirroring the PyTorch forward (training-mode BN)."""
    P = jax.lax.Precision.HIGHEST
    p = jnp.einsum("oc,bcvn->bovn", w_feat, x, precision=P)
    if bn_mode != "none":
        norm = jnp.sqrt(jnp.sum(p * p, axis=2)) + EPS                 # [B, Cout, N]
        mean = jnp.mean(norm, axis=(0, 2), keepdims=True)
        var = jnp.mean((norm - mean) ** 2, axis=(0, 2), keepdims=True)
        norm_bn = (norm - mean) * jax.lax.rsqrt(var + BN_EPS)
        norm_bn = norm_bn * gamma[None, :, None] + beta[None, :, None]
        p = p / norm[:, :, None, :] * norm_bn[:, :, None, :]
    d = jnp.einsum("do,bovn->bdvn", w_dir, p, precision=P)
    dot = jnp.sum(p * d, axis=2, keepdims=True)
    mask = (dot >= 0).astype(p.dtype)
    dsq = jnp.sum(d * d, axis=2, keepdims=True)
    return (negative_slope * p
            + (1 - negative_slope) * (mask * p
                                      + (1 - mask) * (p - dot / (dsq + EPS) * d)))


if __name__ == "__main__":
    key = jax.random.PRNGKey(0)
    kx, kf, kd, kg, kb = jax.random.split(key, 5)

    B, Cin, Cout, N = 2, 4, 8, 16            # x: [B, in_channels, 3, N_samples]
    x = jax.random.normal(kx, (B, Cin, 3, N), dtype=jnp.float32)
    w_feat = 0.5 * jax.random.normal(kf, (Cout, Cin), dtype=jnp.float32)   # VNLinear
    w_dir = 0.5 * jax.random.normal(kd, (Cout, Cout), dtype=jnp.float32)   # map_to_dir
    gamma = jax.random.uniform(kg, (Cout,), minval=0.5, maxval=1.5, dtype=jnp.float32)
    beta = jax.random.uniform(kb, (Cout,), minval=-0.2, maxval=0.2, dtype=jnp.float32)

    for bn_mode in ("norm", "none"):          # 'norm' is the module default
        out = vn_linear_and_leaky_relu(x, w_feat, w_dir, gamma, beta, bn_mode=bn_mode)
        out = jax.block_until_ready(out)
        ref = _reference(x, w_feat, w_dir, gamma, beta, bn_mode=bn_mode)
        assert out.shape == (B, Cout, 3, N) and out.dtype == x.dtype
        assert jnp.allclose(out, ref, atol=1e-4, rtol=1e-4), f"mismatch ({bn_mode})"

    print("KERNEL_OK")
</pallas_src>

<mosaic_0001>
module attributes {stable_mosaic.version = 11 : i64} {
  func.func @_vn_stats_kernel(%arg0: i32, %arg1: i32, %arg2: memref<1x4x3x16xf32, #tpu.memory_space<vmem>>, %arg3: memref<8x4xf32, #tpu.memory_space<vmem>>, %arg4: memref<1x1x8x2xf32, #tpu.memory_space<vmem>>) attributes {dimension_semantics = [#tpu.dimension_semantics<parallel>, #tpu.dimension_semantics<parallel>], iteration_bounds = array<i64: 2, 1>, scalar_prefetch = 0 : i64, scratch_operands = 0 : i64, tpu.core_type = #tpu.core_type<tc>, window_params = [{transform_indices = @transform_0, window_bounds = array<i64: 1, 4, 3, 16>}, {pipeline_mode = #tpu.pipeline_mode<synchronous>, transform_indices = @transform_1, window_bounds = array<i64: 8, 4>}, {transform_indices = @transform_2, window_bounds = array<i64: 1, 1, 8, 2>}]} {
    %c0 = arith.constant 0 : index
    %c0_0 = arith.constant 0 : index
    %0 = vector.load %arg3[%c0, %c0_0] : memref<8x4xf32, #tpu.memory_space<vmem>>, vector<8x4xf32>
    %c0_1 = arith.constant 0 : index
    %c0_2 = arith.constant 0 : index
    %c0_3 = arith.constant 0 : index
    %c0_4 = arith.constant 0 : index
    %1 = vector.load %arg2[%c0_1, %c0_2, %c0_3, %c0_4] : memref<1x4x3x16xf32, #tpu.memory_space<vmem>>, vector<1x4x1x16xf32>
    %2 = vector.shape_cast %1 : vector<1x4x1x16xf32> to vector<4x16xf32>
    %cst = arith.constant dense<0.000000e+00> : vector<8x16xf32>
    %3 = tpu.matmul %0, %2, %cst {dimension_numbers = #tpu.dot_dimension_numbers<[1], [0], [0], [1], [0, 0, 1, 1], [], []>, precision = #tpu.contract_precision<fp32>} : vector<8x4xf32>, vector<4x16xf32>, vector<8x16xf32> -> vector<8x16xf32>
    %4 = arith.mulf %3, %3 : vector<8x16xf32>
    %c0_5 = arith.constant 0 : index
    %c0_6 = arith.constant 0 : index
    %c1 = arith.constant 1 : index
    %c0_7 = arith.constant 0 : index
    %5 = vector.load %arg2[%c0_5, %c0_6, %c1, %c0_7] : memref<1x4x3x16xf32, #tpu.memory_space<vmem>>, vector<1x4x1x16xf32>
    %6 = vector.shape_cast %5 : vector<1x4x1x16xf32> to vector<4x16xf32>
    %cst_8 = arith.constant dense<0.000000e+00> : vector<8x16xf32>
    %7 = tpu.matmul %0, %6, %cst_8 {dimension_numbers = #tpu.dot_dimension_numbers<[1], [0], [0], [1], [0, 0, 1, 1], [], []>, precision = #tpu.contract_precision<fp32>} : vector<8x4xf32>, vector<4x16xf32>, vector<8x16xf32> -> vector<8x16xf32>
    %8 = arith.mulf %7, %7 : vector<8x16xf32>
    %9 = arith.addf %4, %8 : vector<8x16xf32>
    %c0_9 = arith.constant 0 : index
    %c0_10 = arith.constant 0 : index
    %c2 = arith.constant 2 : index
    %c0_11 = arith.constant 0 : index
    %10 = vector.load %arg2[%c0_9, %c0_10, %c2, %c0_11] : memref<1x4x3x16xf32, #tpu.memory_space<vmem>>, vector<1x4x1x16xf32>
    %11 = vector.shape_cast %10 : vector<1x4x1x16xf32> to vector<4x16xf32>
    %cst_12 = arith.constant dense<0.000000e+00> : vector<8x16xf32>
    %12 = tpu.matmul %0, %11, %cst_12 {dimension_numbers = #tpu.dot_dimension_numbers<[1], [0], [0], [1], [0, 0, 1, 1], [], []>, precision = #tpu.contract_precision<fp32>} : vector<8x4xf32>, vector<4x16xf32>, vector<8x16xf32> -> vector<8x16xf32>
    %13 = arith.mulf %12, %12 : vector<8x16xf32>
    %14 = arith.addf %9, %13 : vector<8x16xf32>
    %15 = math.sqrt %14 : vector<8x16xf32>
    %cst_13 = arith.constant 9.99999993E-9 : f32
    %16 = vector.broadcast %cst_13 : f32 to vector<8x16xf32>
    %17 = arith.addf %15, %16 : vector<8x16xf32>
    %cst_14 = arith.constant dense<0.000000e+00> : vector<8xf32>
    %18 = vector.multi_reduction <add>, %17, %cst_14 [1] : vector<8x16xf32> to vector<8xf32>
    %19 = vector.shape_cast %18 : vector<8xf32> to vector<8x1xf32>
    %20 = arith.mulf %17, %17 : vector<8x16xf32>
    %cst_15 = arith.constant dense<0.000000e+00> : vector<8xf32>
    %21 = vector.multi_reduction <add>, %20, %cst_15 [1] : vector<8x16xf32> to vector<8xf32>
    %22 = vector.shape_cast %21 : vector<8xf32> to vector<8x1xf32>
    %23 = tpu.concatenate %19, %22 in 1 : vector<8x1xf32>, vector<8x1xf32> -> vector<8x2xf32>
    %c0_16 = arith.constant 0 : index
    %c0_17 = arith.constant 0 : index
    %c0_18 = arith.constant 0 : index
    %c0_19 = arith.constant 0 : index
    %24 = vector.load %arg4[%c0_16, %c0_17, %c0_18, %c0_19] : memref<1x1x8x2xf32, #tpu.memory_space<vmem>>, vector<1x1x8x2xf32>
    %25 = vector.shape_cast %24 : vector<1x1x8x2xf32> to vector<8x2xf32>
    %26 = vector.shape_cast %23 : vector<8x2xf32> to vector<1x1x8x2xf32>
    tpu.vector_store %arg4[%c0_16, %c0_17, %c0_18, %c0_19], %26 {strides = array<i32>} : memref<1x1x8x2xf32, #tpu.memory_space<vmem>>, vector<1x1x8x2xf32>,
    return
  }
  func.func @transform_0(%arg0: i32, %arg1: i32) -> (i32, i32, i32, i32) {
    %c0_i32 = arith.constant 0 : i32
    %c0_i32_0 = arith.constant 0 : i32
    %c0_i32_1 = arith.constant 0 : i32
    return %arg0, %c0_i32, %c0_i32_0, %arg1 : i32, i32, i32, i32
  }
  func.func @transform_1(%arg0: i32, %arg1: i32) -> (i32, i32) {
    %c0_i32 = arith.constant 0 : i32
    %c0_i32_0 = arith.constant 0 : i32
    %c0_i32_1 = arith.constant 0 : i32
    return %c0_i32, %c0_i32_0 : i32, i32
  }
  func.func @transform_2(%arg0: i32, %arg1: i32) -> (i32, i32, i32, i32) {
    %c0_i32 = arith.constant 0 : i32
    %c0_i32_0 = arith.constant 0 : i32
    %c0_i32_1 = arith.constant 0 : i32
    return %arg0, %arg1, %c0_i32, %c0_i32_0 : i32, i32, i32, i32
  }
}

module attributes {stable_mosaic.version = 11 : i64} {
  func.func @_vn_apply_kernel(%arg0: i32, %arg1: i32, %arg2: memref<1x4x3x16xf32, #tpu.memory_space<vmem>>, %arg3: memref<8x4xf32, #tpu.memory_space<vmem>>, %arg4: memref<8x8xf32, #tpu.memory_space<vmem>>, %arg5: memref<8x1xf32, #tpu.memory_space<vmem>>, %arg6: memref<8x1xf32, #tpu.memory_space<vmem>>, %arg7: memref<1x8x3x16xf32, #tpu.memory_space<vmem>>) attributes {dimension_semantics = [#tpu.dimension_semantics<parallel>, #tpu.dimension_semantics<parallel>], iteration_bounds = array<i64: 2, 1>, scalar_prefetch = 0 : i64, scratch_operands = 0 : i64, tpu.core_type = #tpu.core_type<tc>, window_params = [{transform_indices = @transform_0, window_bounds = array<i64: 1, 4, 3, 16>}, {pipeline_mode = #tpu.pipeline_mode<synchronous>, transform_indices = @transform_1, window_bounds = array<i64: 8, 4>}, {pipeline_mode = #tpu.pipeline_mode<synchronous>, transform_indices = @transform_2, window_bounds = array<i64: 8, 8>}, {pipeline_mode = #tpu.pipeline_mode<synchronous>, transform_indices = @transform_3, window_bounds = array<i64: 8, 1>}, {pipeline_mode = #tpu.pipeline_mode<synchronous>, transform_indices = @transform_4, window_bounds = array<i64: 8, 1>}, {transform_indices = @transform_5, window_bounds = array<i64: 1, 8, 3, 16>}]} {
    %c0 = arith.constant 0 : index
    %c0_0 = arith.constant 0 : index
    %0 = vector.load %arg3[%c0, %c0_0] : memref<8x4xf32, #tpu.memory_space<vmem>>, vector<8x4xf32>
    %c0_1 = arith.constant 0 : index
    %c0_2 = arith.constant 0 : index
    %1 = vector.load %arg4[%c0_1, %c0_2] : memref<8x8xf32, #tpu.memory_space<vmem>>, vector<8x8xf32>
    %c0_3 = arith.constant 0 : index
    %c0_4 = arith.constant 0 : index
    %c0_5 = arith.constant 0 : index
    %c0_6 = arith.constant 0 : index
    %2 = vector.load %arg2[%c0_3, %c0_4, %c0_5, %c0_6] : memref<1x4x3x16xf32, #tpu.memory_space<vmem>>, vector<1x4x1x16xf32>
    %3 = vector.shape_cast %2 : vector<1x4x1x16xf32> to vector<4x16xf32>
    %cst = arith.constant dense<0.000000e+00> : vector<8x16xf32>
    %4 = tpu.matmul %0, %3, %cst {dimension_numbers = #tpu.dot_dimension_numbers<[1], [0], [0], [1], [0, 0, 1, 1], [], []>, precision = #tpu.contract_precision<fp32>} : vector<8x4xf32>, vector<4x16xf32>, vector<8x16xf32> -> vector<8x16xf32>
    %5 = arith.mulf %4, %4 : vector<8x16xf32>
    %c0_7 = arith.constant 0 : index
    %c0_8 = arith.constant 0 : index
    %c1 = arith.constant 1 : index
    %c0_9 = arith.constant 0 : index
    %6 = vector.load %arg2[%c0_7, %c0_8, %c1, %c0_9] : memref<1x4x3x16xf32, #tpu.memory_space<vmem>>, vector<1x4x1x16xf32>
    %7 = vector.shape_cast %6 : vector<1x4x1x16xf32> to vector<4x16xf32>
    %cst_10 = arith.constant dense<0.000000e+00> : vector<8x16xf32>
    %8 = tpu.matmul %0, %7, %cst_10 {dimension_numbers = #tpu.dot_dimension_numbers<[1], [0], [0], [1], [0, 0, 1, 1], [], []>, precision = #tpu.contract_precision<fp32>} : vector<8x4xf32>, vector<4x16xf32>, vector<8x16xf32> -> vector<8x16xf32>
    %9 = arith.mulf %8, %8 : vector<8x16xf32>
    %10 = arith.addf %5, %9 : vector<8x16xf32>
    %c0_11 = arith.constant 0 : index
    %c0_12 = arith.constant 0 : index
    %c2 = arith.constant 2 : index
    %c0_13 = arith.constant 0 : index
    %11 = vector.load %arg2[%c0_11, %c0_12, %c2, %c0_13] : memref<1x4x3x16xf32, #tpu.memory_space<vmem>>, vector<1x4x1x16xf32>
    %12 = vector.shape_cast %11 : vector<1x4x1x16xf32> to vector<4x16xf32>
    %cst_14 = arith.constant dense<0.000000e+00> : vector<8x16xf32>
    %13 = tpu.matmul %0, %12, %cst_14 {dimension_numbers = #tpu.dot_dimension_numbers<[1], [0], [0], [1], [0, 0, 1, 1], [], []>, precision = #tpu.contract_precision<fp32>} : vector<8x4xf32>, vector<4x16xf32>, vector<8x16xf32> -> vector<8x16xf32>
    %14 = arith.mulf %13, %13 : vector<8x16xf32>
    %15 = arith.addf %10, %14 : vector<8x16xf32>
    %16 = math.sqrt %15 : vector<8x16xf32>
    %cst_15 = arith.constant 9.99999993E-9 : f32
    %17 = vector.broadcast %cst_15 : f32 to vector<8x16xf32>
    %18 = arith.addf %16, %17 : vector<8x16xf32>
    %c0_16 = arith.constant 0 : index
    %c0_17 = arith.constant 0 : index
    %19 = vector.load %arg5[%c0_16, %c0_17] : memref<8x1xf32, #tpu.memory_space<vmem>>, vector<8x1xf32>
    %c0_18 = arith.constant 0 : index
    %c0_19 = arith.constant 0 : index
    %20 = vector.load %arg6[%c0_18, %c0_19] : memref<8x1xf32, #tpu.memory_space<vmem>>, vector<8x1xf32>
    %21 = tpu.reciprocal %18 : vector<8x16xf32> -> vector<8x16xf32>
    %22 = vector.broadcast %20 : vector<8x1xf32> to vector<8x16xf32>
    %23 = arith.mulf %22, %21 : vector<8x16xf32>
    %24 = vector.broadcast %19 : vector<8x1xf32> to vector<8x16xf32>
    %25 = arith.addf %24, %23 : vector<8x16xf32>
    %26 = arith.mulf %4, %25 : vector<8x16xf32>
    %27 = arith.mulf %8, %25 : vector<8x16xf32>
    %28 = arith.mulf %13, %25 : vector<8x16xf32>
    %cst_20 = arith.constant dense<0.000000e+00> : vector<8x16xf32>
    %29 = tpu.matmul %1, %26, %cst_20 {dimension_numbers = #tpu.dot_dimension_numbers<[1], [0], [0], [1], [0, 0, 1, 1], [], []>, precision = #tpu.contract_precision<fp32>} : vector<8x8xf32>, vector<8x16xf32>, vector<8x16xf32> -> vector<8x16xf32>
    %cst_21 = arith.constant dense<0.000000e+00> : vector<8x16xf32>
    %30 = tpu.matmul %1, %27, %cst_21 {dimension_numbers = #tpu.dot_dimension_numbers<[1], [0], [0], [1], [0, 0, 1, 1], [], []>, precision = #tpu.contract_precision<fp32>} : vector<8x8xf32>, vector<8x16xf32>, vector<8x16xf32> -> vector<8x16xf32>
    %cst_22 = arith.constant dense<0.000000e+00> : vector<8x16xf32>
    %31 = tpu.matmul %1, %28, %cst_22 {dimension_numbers = #tpu.dot_dimension_numbers<[1], [0], [0], [1], [0, 0, 1, 1], [], []>, precision = #tpu.contract_precision<fp32>} : vector<8x8xf32>, vector<8x16xf32>, vector<8x16xf32> -> vector<8x16xf32>
    %32 = arith.mulf %26, %29 : vector<8x16xf32>
    %33 = arith.mulf %27, %30 : vector<8x16xf32>
    %34 = arith.addf %32, %33 : vector<8x16xf32>
    %35 = arith.mulf %28, %31 : vector<8x16xf32>
    %36 = arith.addf %34, %35 : vector<8x16xf32>
    %37 = arith.mulf %29, %29 : vector<8x16xf32>
    %38 = arith.mulf %30, %30 : vector<8x16xf32>
    %39 = arith.addf %37, %38 : vector<8x16xf32>
    %40 = arith.mulf %31, %31 : vector<8x16xf32>
    %41 = arith.addf %39, %40 : vector<8x16xf32>
    %cst_23 = arith.constant 0.000000e+00 : f32
    %42 = vector.broadcast %cst_23 : f32 to vector<8x16xf32>
    %43 = arith.cmpf olt, %36, %42 : vector<8x16xf32>
    %cst_24 = arith.constant 9.99999993E-9 : f32
    %44 = vector.broadcast %cst_24 : f32 to vector<8x16xf32>
    %45 = arith.addf %41, %44 : vector<8x16xf32>
    %46 = tpu.reciprocal %45 : vector<8x16xf32> -> vector<8x16xf32>
    %47 = arith.mulf %36, %46 : vector<8x16xf32>
    %cst_25 = arith.constant 0.000000e+00 : f32
    %48 = vector.broadcast %cst_25 : f32 to vector<8x16xf32>
    %49 = arith.select %43, %47, %48 : vector<8x16xi1>, vector<8x16xf32>
    %cst_26 = arith.constant 8.000000e-01 : f32
    %50 = vector.broadcast %cst_26 : f32 to vector<8x16xf32>
    %51 = arith.mulf %50, %49 : vector<8x16xf32>
    %52 = arith.mulf %51, %29 : vector<8x16xf32>
    %53 = arith.subf %26, %52 : vector<8x16xf32>
    %c0_27 = arith.constant 0 : index
    %c0_28 = arith.constant 0 : index
    %c0_29 = arith.constant 0 : index
    %c0_30 = arith.constant 0 : index
    %54 = vector.load %arg7[%c0_27, %c0_28, %c0_29, %c0_30] : memref<1x8x3x16xf32, #tpu.memory_space<vmem>>, vector<1x8x1x16xf32>
    %55 = vector.shape_cast %54 : vector<1x8x1x16xf32> to vector<8x16xf32>
    %56 = vector.shape_cast %53 : vector<8x16xf32> to vector<1x8x1x16xf32>
    tpu.vector_store %arg7[%c0_27, %c0_28, %c0_29, %c0_30], %56 {strides = array<i32>} : memref<1x8x3x16xf32, #tpu.memory_space<vmem>>, vector<1x8x1x16xf32>,
    %cst_31 = arith.constant 8.000000e-01 : f32
    %57 = vector.broadcast %cst_31 : f32 to vector<8x16xf32>
    %58 = arith.mulf %57, %49 : vector<8x16xf32>
    %59 = arith.mulf %58, %30 : vector<8x16xf32>
    %60 = arith.subf %27, %59 : vector<8x16xf32>
    %c0_32 = arith.constant 0 : index
    %c0_33 = arith.constant 0 : index
    %c1_34 = arith.constant 1 : index
    %c0_35 = arith.constant 0 : index
    %61 = vector.load %arg7[%c0_32, %c0_33, %c1_34, %c0_35] : memref<1x8x3x16xf32, #tpu.memory_space<vmem>>, vector<1x8x1x16xf32>
    %62 = vector.shape_cast %61 : vector<1x8x1x16xf32> to vector<8x16xf32>
    %63 = vector.shape_cast %60 : vector<8x16xf32> to vector<1x8x1x16xf32>
    tpu.vector_store %arg7[%c0_32, %c0_33, %c1_34, %c0_35], %63 {strides = array<i32>} : memref<1x8x3x16xf32, #tpu.memory_space<vmem>>, vector<1x8x1x16xf32>,
    %cst_36 = arith.constant 8.000000e-01 : f32
    %64 = vector.broadcast %cst_36 : f32 to vector<8x16xf32>
    %65 = arith.mulf %64, %49 : vector<8x16xf32>
    %66 = arith.mulf %65, %31 : vector<8x16xf32>
    %67 = arith.subf %28, %66 : vector<8x16xf32>
    %c0_37 = arith.constant 0 : index
    %c0_38 = arith.constant 0 : index
    %c2_39 = arith.constant 2 : index
    %c0_40 = arith.constant 0 : index
    %68 = vector.load %arg7[%c0_37, %c0_38, %c2_39, %c0_40] : memref<1x8x3x16xf32, #tpu.memory_space<vmem>>, vector<1x8x1x16xf32>
    %69 = vector.shape_cast %68 : vector<1x8x1x16xf32> to vector<8x16xf32>
    %70 = vector.shape_cast %67 : vector<8x16xf32> to vector<1x8x1x16xf32>
    tpu.vector_store %arg7[%c0_37, %c0_38, %c2_39, %c0_40], %70 {strides = array<i32>} : memref<1x8x3x16xf32, #tpu.memory_space<vmem>>, vector<1x8x1x16xf32>,
    return
  }
  func.func @transform_0(%arg0: i32, %arg1: i32) -> (i32, i32, i32, i32) {
    %c0_i32 = arith.constant 0 : i32
    %c0_i32_0 = arith.constant 0 : i32
    %c0_i32_1 = arith.constant 0 : i32
    return %arg0, %c0_i32, %c0_i32_0, %arg1 : i32, i32, i32, i32
  }
  func.func @transform_1(%arg0: i32, %arg1: i32) -> (i32, i32) {
    %c0_i32 = arith.constant 0 : i32
    %c0_i32_0 = arith.constant 0 : i32
    %c0_i32_1 = arith.constant 0 : i32
    return %c0_i32, %c0_i32_0 : i32, i32
  }
  func.func @transform_2(%arg0: i32, %arg1: i32) -> (i32, i32) {
    %c0_i32 = arith.constant 0 : i32
    %c0_i32_0 = arith.constant 0 : i32
    %c0_i32_1 = arith.constant 0 : i32
    return %c0_i32, %c0_i32_0 : i32, i32
  }
  func.func @transform_3(%arg0: i32, %arg1: i32) -> (i32, i32) {
    %c0_i32 = arith.constant 0 : i32
    %c0_i32_0 = arith.constant 0 : i32
    %c0_i32_1 = arith.constant 0 : i32
    return %c0_i32, %c0_i32_0 : i32, i32
  }
  func.func @transform_4(%arg0: i32, %arg1: i32) -> (i32, i32) {
    %c0_i32 = arith.constant 0 : i32
    %c0_i32_0 = arith.constant 0 : i32
    %c0_i32_1 = arith.constant 0 : i32
    return %c0_i32, %c0_i32_0 : i32, i32
  }
  func.func @transform_5(%arg0: i32, %arg1: i32) -> (i32, i32, i32, i32) {
    %c0_i32 = arith.constant 0 : i32
    %c0_i32_0 = arith.constant 0 : i32
    %c0_i32_1 = arith.constant 0 : i32
    return %arg0, %c0_i32, %c0_i32_0, %arg1 : i32, i32, i32, i32
  }
}

</mosaic_0001>

<llo_original>
// kernel: vn_linear_and_leaky_relu.2
$region0: #{vn_linear_and_leaky_relu.2}
  #allocation0 [shape = 'u32[]', space=smem, size = 0x4, offset = 0x4, fixed_abs, tag = 'smem constant byte address 0x4 - core index']
  #allocation1 [shape = 'u32[72,128]{1,0:T(1,128)}', space=vmem, size = 0x9000, scoped, tag = 'internal scratch']
  %s0 = inlined_call_operand.vmem [shape: f32[2,4,3,16], index: 0, kind: input, shape index: {}]
  %s1 = inlined_call_operand.vmem [shape: f32[8,4], index: 1, kind: input, shape index: {}]
  %s2 = inlined_call_operand.vmem [shape: f32[2,1,8,2], index: 2, kind: output, shape index: {}]
  %s3 = sld [smem:[#allocation0]]
  $region41: #{vn_linear_and_leaky_relu.2} parent=0
    _
  %s5 = ssub.s32 1, %s3
  %s6 = scalar_select 0, %s5, %s3
  loop: start=0, step=1, limit=4
  $region2: #{vn_linear_and_leaky_relu.2} parent=0 // loop_pre_header
    _
  $region3: #{vn_linear_and_leaky_relu.2} parent=0 // loop_header
    %s8 = sphi 0, %s12
    %p9 = scmp.ge.s32.totalorder %s8, 4
    %s15 = sphi 0, %s27
    %s16 = sphi 0, %s23
    %s17 = sphi 0, %s15
    %s18 = sphi 0, %s16
    %s19 = sphi 0, %s17
    %s20 = sphi 0, %s18
    %s32 = sphi 0, %s34
    %s35 = sphi 0, %s32
    %s36 = sphi 0, %s35
    %s52 = sphi 0, %s36
    %s56 = sphi 0, %s56
    %s58 = sphi 0, %s56
    %s59 = sphi 0, %s58
    %s73 = sphi 0, %s59
    %s81 = sphi 0, %s83
    %s84 = sphi 0, %s81
    %s85 = sphi 0, %s84
    %s101 = sphi 0, %s85
  $region4: #{vn_linear_and_leaky_relu.2} parent=0 // loop_header_branch
    %11 = sbr.rel (%p9) target = $region8
  $region5: #{vn_linear_and_leaky_relu.2} parent=0 // loop_body
    %s13 = ssub.s32 %s8, 1
    %s14 = ssub.s32 %s8, 2
    %s21 = sadd.s32 1, %s16
    %p22 = scmp.ge.s32.totalorder %s21, 1
    %s23 = scalar_select %p22, 0, %s21
    %s24 = sadd.s32 1, %s15
    %s25 = scalar_select %p22, %s24, %s15
    %p26 = scmp.ge.s32.totalorder %s25, 2
    %s27 = scalar_select %p26, 0, %s25
    %s28 = ssub.s32 %s15, %s27
    %s29 = ssub.s32 %s16, %s23
    %s30 = sor.u32 %s28, %s29
    %p31 = scmp.eq.s32.totalorder %s30, 0
    %s33 = sadd.s32 %s32, 1
    %s34 = scalar_select %p31, %s32, %s33
    %p37 = pneg %p31
    %p38 = scmp.eq.s32.totalorder %s8, 1
    %p39 = por %p37, %p38
    %p40 = scmp.ne.s32.totalorder %s32, %s35
    %p41 = scmp.eq.s32.totalorder %s8, 0
    %p42 = por %p40, %p41
    %p43 = scmp.ne.s32.totalorder %s32, %s35
    %p44 = scmp.eq.s32.totalorder %s13, 1
    %p45 = por %p43, %p44
    %p46 = scmp.ne.s32.totalorder %s35, %s36
    %p47 = scmp.eq.s32.totalorder %s13, 0
    %p48 = por %p46, %p47
    %p49 = scmp.ne.s32.totalorder %s35, %s36
    %p50 = scmp.eq.s32.totalorder %s14, 1
    %p51 = por %p49, %p50
    %p53 = scmp.ne.s32.totalorder %s36, %s52
    %p54 = scmp.eq.s32.totalorder %s14, 0
    %p55 = por %p53, %p54
    %s57 = sadd.s32 %s56, 1
    %p60 = scmp.eq.s32.totalorder %s8, 1
    %p61 = scmp.ne.s32.totalorder %s56, %s58
    %p62 = scmp.eq.s32.totalorder %s8, 0
    %p63 = por %p61, %p62
    %p64 = scmp.ne.s32.totalorder %s56, %s58
    %p65 = scmp.eq.s32.totalorder %s13, 1
    %p66 = por %p64, %p65
    %p67 = scmp.ne.s32.totalorder %s58, %s59
    %p68 = scmp.eq.s32.totalorder %s13, 0
    %p69 = por %p67, %p68
    %p70 = scmp.ne.s32.totalorder %s58, %s59
    %p71 = scmp.eq.s32.totalorder %s14, 1
    %p72 = por %p70, %p71
    %p74 = scmp.ne.s32.totalorder %s59, %s73
    %p75 = scmp.eq.s32.totalorder %s14, 0
    %p76 = por %p74, %p75
    %s77 = ssub.s32 %s15, %s27
    %s78 = ssub.s32 %s16, %s23
    %s79 = sor.u32 %s77, %s78
    %p80 = scmp.eq.s32.totalorder %s79, 0
    %s82 = sadd.s32 %s81, 1
    %s83 = scalar_select %p80, %s81, %s82
    %p86 = pneg %p80
    %p87 = scmp.eq.s32.totalorder %s8, 1
    %p88 = por %p86, %p87
    %p89 = scmp.ne.s32.totalorder %s81, %s84
    %p90 = scmp.eq.s32.totalorder %s8, 0
    %p91 = por %p89, %p90
    %p92 = scmp.ne.s32.totalorder %s81, %s84
    %p93 = scmp.eq.s32.totalorder %s13, 1
    %p94 = por %p92, %p93
    %p95 = scmp.ne.s32.totalorder %s84, %s85
    %p96 = scmp.eq.s32.totalorder %s13, 0
    %p97 = por %p95, %p96
    %p98 = scmp.ne.s32.totalorder %s84, %s85
    %p99 = scmp.eq.s32.totalorder %s14, 1
    %p100 = por %p98, %p99
    %p102 = scmp.ne.s32.totalorder %s85, %s101
    %p103 = scmp.eq.s32.totalorder %s14, 0
    %p104 = por %p102, %p103
    %p105 = scmp.le.s32.totalorder 1, %s8
    %p106 = scmp.lt.s32.totalorder %s8, 3
    %p107 = pnand %p105, %p106
    %p108 = pneg %p107
    // Predicated region
    $region9: #{vn_linear_and_leaky_relu.2} parent=5 // pred_check
      _
    $region10: #{vn_linear_and_leaky_relu.2} parent=5 // pred_check_branch
      %110 = sbr.rel (%p107) target = $region12
    $region11: #{vn_linear_and_leaky_relu.2} parent=5 // pred_region
      %s111 = ssub.s32 %s8, 1
      // Predicated region
      $region13: #{vn_linear_and_leaky_relu.2} parent=11 // pred_check
        %p112 = pneg %p69
      $region14: #{vn_linear_and_leaky_relu.2} parent=11 // pred_check_branch
        %114 = sbr.rel (%p112) target = $region16
      $region15: #{vn_linear_and_leaky_relu.2} parent=11 // pred_region
        _
      $region16: #{vn_linear_and_leaky_relu.2} parent=11 // pred_fallthru
        _
    $region12: #{vn_linear_and_leaky_relu.2} parent=5 // pred_fallthru
      _
    %p115 = scmp.lt.s32.totalorder %s8, 2
    // Predicated region
    $region17: #{vn_linear_and_leaky_relu.2} parent=5 // pred_check
      %p116 = pneg %p115
    $region18: #{vn_linear_and_leaky_relu.2} parent=5 // pred_check_branch
      %118 = sbr.rel (%p116) target = $region20
    $region19: #{vn_linear_and_leaky_relu.2} parent=5 // pred_region
      // Predicated region
      $region21: #{vn_linear_and_leaky_relu.2} parent=19 // pred_check
        %p119 = pneg %p42
      $region22: #{vn_linear_and_leaky_relu.2} parent=19 // pred_check_branch
        %121 = sbr.rel (%p119) target = $region24
      $region23: #{vn_linear_and_leaky_relu.2} parent=19 // pred_region
        %p122 = scmp.lt.s32.totalorder %s15, 1
        %s123 = scalar_select %p122, %s15, 1
        %p124 = scmp.lt.s32.totalorder %s16, 0
        %s125 = scalar_select %p124, %s16, 0
        %s126 = smul.addr %s123, 4
        %s127 = sadd.s32 %s125, %s126
        %s128 = smul.addr %s127, 4
        %s129 = scalar_lea.vmem %s0, %s128
      $region24: #{vn_linear_and_leaky_relu.2} parent=19 // pred_fallthru
        _
    $region20: #{vn_linear_and_leaky_relu.2} parent=5 // pred_fallthru
      _
    %p130 = scmp.le.s32.totalorder 1, %s8
    %p131 = scmp.lt.s32.totalorder %s8, 3
    %p132 = pnand %p130, %p131
    %p133 = pneg %p132
    // Predicated region
    $region25: #{vn_linear_and_leaky_relu.2} parent=5 // pred_check
      _
    $region26: #{vn_linear_and_leaky_relu.2} parent=5 // pred_check_branch
      %135 = sbr.rel (%p132) target = $region28
    $region27: #{vn_linear_and_leaky_relu.2} parent=5 // pred_region
      %s136 = ssub.s32 %s8, 1
      %p137 = scmp.lt.s32.totalorder %s17, 1
      %s138 = scalar_select %p137, %s17, 1
      %p139 = scmp.lt.s32.totalorder %s18, 0
      %s140 = scalar_select %p139, %s18, 0
      %s141 = smul.addr %s138, 4
      %s142 = sadd.s32 %s140, %s141
      %s143 = smul.addr %s142, 4
      %s144 = scalar_lea.vmem %s0, %s143
      %p145 = pneg %p48
      %p146 = pneg %p45
      %p147 = pneg %p69
      %p148 = pneg %p66
      %p149 = pneg %p97
      %p150 = pneg %p94
      %p151 = scmp.lt.s32.totalorder %s17, 1
      %s152 = scalar_select %p151, %s17, 1
      %p153 = scmp.lt.s32.totalorder %s18, 0
      %s154 = scalar_select %p153, %s18, 0
      %s155 = sadd.s32 %s154, %s152
      %s156 = smul.addr %s155, 8
      %s157 = scalar_lea.vmem %s2, %s156
      %p158 = scmp.lt.s32.totalorder %s17, 1
      %s159 = scalar_select %p158, %s17, 1
      %p160 = scmp.lt.s32.totalorder %s18, 0
      %s161 = scalar_select %p160, %s18, 0
      %s162 = smul.addr %s159, 4
      %s163 = sadd.s32 %s161, %s162
      %s164 = smul.addr %s163, 4
      %s165 = scalar_lea.vmem %s0, %s164
      %p166 = scmp.lt.s32.totalorder %s17, 1
      %s167 = scalar_select %p166, %s17, 1
      %p168 = scmp.lt.s32.totalorder %s18, 0
      %s169 = scalar_select %p168, %s18, 0
      %s170 = sadd.s32 %s169, %s167
      %s171 = smul.addr %s170, 8
      %s172 = scalar_lea.vmem %s2, %s171
      %v173 = vld [vmem:[%s1] sm:$0xff]
      %v174 = vld [vmem:[%s165] sm:$0x1]
      %v175 = vld [vmem:[%s165 + $0x4] sm:$0x1]
      %v176 = vld [vmem:[%s165 + $0x8] sm:$0x1]
      %v177 = vld [vmem:[%s165 + $0xc] sm:$0x1]
      %v182 = vrot.slane %v175, 7
      %vm183 = vcmask 1041409
      %v184 = vsel %vm183, %v182, %v174
      %v185 = vrot.slane %v176, 6
      %vm186 = vcmask 1042434
      %v187 = vsel %vm186, %v185, %v184
      %v188 = vrot.slane %v177, 5
      %vm189 = vcmask 1043459
      %v190 = vsel %vm189, %v188, %v187
      %vm191 = vcmask 31744
      %v193 = vsel %vm191, %v173, 0
      %vm195 = vcmask 1043456
      %v196 = vsel %vm195, %v190, 0
      %198 = vmatpush.msra.mxu0 0.0
      %199 = vmatpush.msra.mxu0 0.0
      %200 = vmatpush.msra.mxu0 0.0
      %201 = vmatpush.msra.mxu0 0.0
      %202 = vmatpush.msra.mxu0 0.0
      %203 = vmatpush.msra.mxu0 0.0
      %204 = vmatpush.msra.mxu0 0.0
      %205 = vmatpush.msra.mxu0 0.0
      %206 = vmatpush.msra.mxu0 0.0
      %207 = vmatpush.msra.mxu0 0.0
      %208 = vmatpush.msra.mxu0 0.0
      %209 = vmatpush.msra.mxu0 0.0
      %210 = vmatpush.msra.mxu0 0.0
      %211 = vmatpush.msra.mxu0 0.0
      %212 = vmatpush.msra.mxu0 0.0
      %v213 = vand.u32 %v196, 4294901760
      %214 = vmatpush.msra.mxu0 %v213
      %v215 = vand.u32 %v193, 4294901760
      %v216 = vsub.f32 %v193, %v215
      %v217 = vand.u32 %v216, 4294901760
      %v218 = vsub.f32 %v216, %v217
      %v219 = vand.u32 %v218, 4294901760
      %220 = vmatmul.f32.gmra.mxu0 %v219
      %v221 = vpop.f32.mrf.mxu0
      %v222 = vadd.f32 0.0, %v221
      %223 = vdwg.mxu0
      %224 = vmatpush.msra.mxu0 0.0
      %225 = vmatpush.msra.mxu0 0.0
      %226 = vmatpush.msra.mxu0 0.0
      %227 = vmatpush.msra.mxu0 0.0
      %228 = vmatpush.msra.mxu0 0.0
      %229 = vmatpush.msra.mxu0 0.0
      %230 = vmatpush.msra.mxu0 0.0
      %231 = vmatpush.msra.mxu0 0.0
      %232 = vmatpush.msra.mxu0 0.0
      %233 = vmatpush.msra.mxu0 0.0
      %234 = vmatpush.msra.mxu0 0.0
      %235 = vmatpush.msra.mxu0 0.0
      %236 = vmatpush.msra.mxu0 0.0
      %237 = vmatpush.msra.mxu0 0.0
      %238 = vmatpush.msra.mxu0 0.0
      %v239 = vand.u32 %v196, 4294901760
      %v240 = vsub.f32 %v196, %v239
      %v241 = vand.u32 %v240, 4294901760
      %v242 = vsub.f32 %v240, %v241
      %v243 = vand.u32 %v242, 4294901760
      %244 = vmatpush.msra.mxu0 %v243
      %v245 = vand.u32 %v193, 4294901760
      %246 = vmatmul.f32.gmra.mxu0 %v245
      %v247 = vpop.f32.mrf.mxu0
      %v248 = vadd.f32 %v222, %v247
      %249 = vdwg.mxu0
      %250 = vmatpush.msra.mxu0 0.0
      %251 = vmatpush.msra.mxu0 0.0
      %252 = vmatpush.msra.mxu0 0.0
      %253 = vmatpush.msra.mxu0 0.0
      %254 = vmatpush.msra.mxu0 0.0
      %255 = vmatpush.msra.mxu0 0.0
      %256 = vmatpush.msra.mxu0 0.0
      %257 = vmatpush.msra.mxu0 0.0
      %258 = vmatpush.msra.mxu0 0.0
      %259 = vmatpush.msra.mxu0 0.0
      %260 = vmatpush.msra.mxu0 0.0
      %261 = vmatpush.msra.mxu0 0.0
      %262 = vmatpush.msra.mxu0 0.0
      %263 = vmatpush.msra.mxu0 0.0
      %264 = vmatpush.msra.mxu0 0.0
      %v265 = vand.u32 %v196, 4294901760
      %v266 = vsub.f32 %v196, %v265
      %267 = vmatpush.msra.mxu0 %v266
      %v268 = vand.u32 %v193, 4294901760
      %v269 = vsub.f32 %v193, %v268
      %270 = vmatmul.f32.gmra.mxu0 %v269
      %v271 = vpop.f32.mrf.mxu0
      %v272 = vadd.f32 %v248, %v271
      %273 = vdwg.mxu0
      %274 = vmatpush.msra.mxu0 0.0
      %275 = vmatpush.msra.mxu0 0.0
      %276 = vmatpush.msra.mxu0 0.0
      %277 = vmatpush.msra.mxu0 0.0
      %278 = vmatpush.msra.mxu0 0.0
      %279 = vmatpush.msra.mxu0 0.0
      %280 = vmatpush.msra.mxu0 0.0
      %281 = vmatpush.msra.mxu0 0.0
      %282 = vmatpush.msra.mxu0 0.0
      %283 = vmatpush.msra.mxu0 0.0
      %284 = vmatpush.msra.mxu0 0.0
      %285 = vmatpush.msra.mxu0 0.0
      %286 = vmatpush.msra.mxu0 0.0
      %287 = vmatpush.msra.mxu0 0.0
      %288 = vmatpush.msra.mxu0 0.0
      %v289 = vand.u32 %v196, 4294901760
      %290 = vmatpush.msra.mxu0 %v289
      %v291 = vand.u32 %v193, 4294901760
      %v292 = vsub.f32 %v193, %v291
      %v293 = vand.u32 %v292, 4294901760
      %294 = vmatmul.f32.gmra.mxu0 %v293
      %v295 = vpop.f32.mrf.mxu0
      %v296 = vadd.f32 %v272, %v295
      %297 = vdwg.mxu0
      %298 = vmatpush.msra.mxu0 0.0
      %299 = vmatpush.msra.mxu0 0.0
      %300 = vmatpush.msra.mxu0 0.0
      %301 = vmatpush.msra.mxu0 0.0
      %302 = vmatpush.msra.mxu0 0.0
      %303 = vmatpush.msra.mxu0 0.0
      %304 = vmatpush.msra.mxu0 0.0
      %305 = vmatpush.msra.mxu0 0.0
      %306 = vmatpush.msra.mxu0 0.0
      %307 = vmatpush.msra.mxu0 0.0
      %308 = vmatpush.msra.mxu0 0.0
      %309 = vmatpush.msra.mxu0 0.0
      %310 = vmatpush.msra.mxu0 0.0
      %311 = vmatpush.msra.mxu0 0.0
      %312 = vmatpush.msra.mxu0 0.0
      %v313 = vand.u32 %v196, 4294901760
      %v314 = vsub.f32 %v196, %v313
      %v315 = vand.u32 %v314, 4294901760
      %316 = vmatpush.msra.mxu0 %v315
      %v317 = vand.u32 %v193, 4294901760
      %318 = vmatmul.f32.gmra.mxu0 %v317
      %v319 = vpop.f32.mrf.mxu0
      %v320 = vadd.f32 %v296, %v319
      %321 = vdwg.mxu0
      %322 = vmatpush.msra.mxu0 0.0
      %323 = vmatpush.msra.mxu0 0.0
      %324 = vmatpush.msra.mxu0 0.0
      %325 = vmatpush.msra.mxu0 0.0
      %326 = vmatpush.msra.mxu0 0.0
      %327 = vmatpush.msra.mxu0 0.0
      %328 = vmatpush.msra.mxu0 0.0
      %329 = vmatpush.msra.mxu0 0.0
      %330 = vmatpush.msra.mxu0 0.0
      %331 = vmatpush.msra.mxu0 0.0
      %332 = vmatpush.msra.mxu0 0.0
      %333 = vmatpush.msra.mxu0 0.0
      %334 = vmatpush.msra.mxu0 0.0
      %335 = vmatpush.msra.mxu0 0.0
      %336 = vmatpush.msra.mxu0 0.0
      %v337 = vand.u32 %v196, 4294901760
      %338 = vmatpush.msra.mxu0 %v337
      %v339 = vand.u32 %v193, 4294901760
      %340 = vmatmul.f32.gmra.mxu0 %v339
      %v341 = vpop.f32.mrf.mxu0
      %v342 = vadd.f32 %v320, %v341
      %343 = vdwg.mxu0
      %v344 = vmul.f32 %v342, %v342
      %v345 = vld [vmem:[%s165 + $0x1] sm:$0x1]
      %v346 = vld [vmem:[%s165 + $0x5] sm:$0x1]
      %v347 = vld [vmem:[%s165 + $0x9] sm:$0x1]
      %v348 = vld [vmem:[%s165 + $0xd] sm:$0x1]
      %v353 = vrot.slane %v346, 7
      %v354 = vsel %vm183, %v353, %v345
      %v355 = vrot.slane %v347, 6
      %v356 = vsel %vm186, %v355, %v354
      %v357 = vrot.slane %v348, 5
      %v358 = vsel %vm189, %v357, %v356
      %v359 = vsel %vm195, %v358, 0
      %361 = vmatpush.msra.mxu0 0.0
      %362 = vmatpush.msra.mxu0 0.0
      %363 = vmatpush.msra.mxu0 0.0
      %364 = vmatpush.msra.mxu0 0.0
      %365 = vmatpush.msra.mxu0 0.0
      %366 = vmatpush.msra.mxu0 0.0
      %367 = vmatpush.msra.mxu0 0.0
      %368 = vmatpush.msra.mxu0 0.0
      %369 = vmatpush.msra.mxu0 0.0
      %370 = vmatpush.msra.mxu0 0.0
      %371 = vmatpush.msra.mxu0 0.0
      %372 = vmatpush.msra.mxu0 0.0
      %373 = vmatpush.msra.mxu0 0.0
      %374 = vmatpush.msra.mxu0 0.0
      %375 = vmatpush.msra.mxu0 0.0
      %v376 = vand.u32 %v359, 4294901760
      %377 = vmatpush.msra.mxu0 %v376
      %v378 = vand.u32 %v193, 4294901760
      %v379 = vsub.f32 %v193, %v378
      %v380 = vand.u32 %v379, 4294901760
      %v381 = vsub.f32 %v379, %v380
      %v382 = vand.u32 %v381, 4294901760
      %383 = vmatmul.f32.gmra.mxu0 %v382
      %v384 = vpop.f32.mrf.mxu0
      %v385 = vadd.f32 0.0, %v384
      %386 = vdwg.mxu0
      %387 = vmatpush.msra.mxu0 0.0
      %388 = vmatpush.msra.mxu0 0.0
      %389 = vmatpush.msra.mxu0 0.0
      %390 = vmatpush.msra.mxu0 0.0
      %391 = vmatpush.msra.mxu0 0.0
      %392 = vmatpush.msra.mxu0 0.0
      %393 = vmatpush.msra.mxu0 0.0
      %394 = vmatpush.msra.mxu0 0.0
      %395 = vmatpush.msra.mxu0 0.0
      %396 = vmatpush.msra.mxu0 0.0
      %397 = vmatpush.msra.mxu0 0.0
      %398 = vmatpush.msra.mxu0 0.0
      %399 = vmatpush.msra.mxu0 0.0
      %400 = vmatpush.msra.mxu0 0.0
      %401 = vmatpush.msra.mxu0 0.0
      %v402 = vand.u32 %v359, 4294901760
      %v403 = vsub.f32 %v359, %v402
      %v404 = vand.u32 %v403, 4294901760
      %v405 = vsub.f32 %v403, %v404
      %v406 = vand.u32 %v405, 4294901760
      %407 = vmatpush.msra.mxu0 %v406
      %v408 = vand.u32 %v193, 4294901760
      %409 = vmatmul.f32.gmra.mxu0 %v408
      %v410 = vpop.f32.mrf.mxu0
      %v411 = vadd.f32 %v385, %v410
      %412 = vdwg.mxu0
      %413 = vmatpush.msra.mxu0 0.0
      %414 = vmatpush.msra.mxu0 0.0
      %415 = vmatpush.msra.mxu0 0.0
      %416 = vmatpush.msra.mxu0 0.0
      %417 = vmatpush.msra.mxu0 0.0
      %418 = vmatpush.msra.mxu0 0.0
      %419 = vmatpush.msra.mxu0 0.0
      %420 = vmatpush.msra.mxu0 0.0
      %421 = vmatpush.msra.mxu0 0.0
      %422 = vmatpush.msra.mxu0 0.0
      %423 = vmatpush.msra.mxu0 0.0
      %424 = vmatpush.msra.mxu0 0.0
      %425 = vmatpush.msra.mxu0 0.0
      %426 = vmatpush.msra.mxu0 0.0
      %427 = vmatpush.msra.mxu0 0.0
      %v428 = vand.u32 %v359, 4294901760
      %v429 = vsub.f32 %v359, %v428
      %430 = vmatpush.msra.mxu0 %v429
      %v431 = vand.u32 %v193, 4294901760
      %v432 = vsub.f32 %v193, %v431
      %433 = vmatmul.f32.gmra.mxu0 %v432
      %v434 = vpop.f32.mrf.mxu0
      %v435 = vadd.f32 %v411, %v434
      %436 = vdwg.mxu0
      %437 = vmatpush.msra.mxu0 0.0
      %438 = vmatpush.msra.mxu0 0.0
      %439 = vmatpush.msra.mxu0 0.0
      %440 = vmatpush.msra.mxu0 0.0
      %441 = vmatpush.msra.mxu0 0.0
      %442 = vmatpush.msra.mxu0 0.0
      %443 = vmatpush.msra.mxu0 0.0
      %444 = vmatpush.msra.mxu0 0.0
      %445 = vmatpush.msra.mxu0 0.0
      %446 = vmatpush.msra.mxu0 0.0
      %447 = vmatpush.msra.mxu0 0.0
      %448 = vmatpush.msra.mxu0 0.0
      %449 = vmatpush.msra.mxu0 0.0
      %450 = vmatpush.msra.mxu0 0.0
      %451 = vmatpush.msra.mxu0 0.0
      %v452 = vand.u32 %v359, 4294901760
      %453 = vmatpush.msra.mxu0 %v452
      %v454 = vand.u32 %v193, 4294901760
      %v455 = vsub.f32 %v193, %v454
      %v456 = vand.u32 %v455, 4294901760
      %457 = vmatmul.f32.gmra.mxu0 %v456
      %v458 = vpop.f32.mrf.mxu0
      %v459 = vadd.f32 %v435, %v458
      %460 = vdwg.mxu0
      %461 = vmatpush.msra.mxu0 0.0
      %462 = vmatpush.msra.mxu0 0.0
      %463 = vmatpush.msra.mxu0 0.0
      %464 = vmatpush.msra.mxu0 0.0
      %465 = vmatpush.msra.mxu0 0.0
      %466 = vmatpush.msra.mxu0 0.0
      %467 = vmatpush.msra.mxu0 0.0
      %468 = vmatpush.msra.mxu0 0.0
      %469 = vmatpush.msra.mxu0 0.0
      %470 = vmatpush.msra.mxu0 0.0
      %471 = vmatpush.msra.mxu0 0.0
      %472 = vmatpush.msra.mxu0 0.0
      %473 = vmatpush.msra.mxu0 0.0
      %474 = vmatpush.msra.mxu0 0.0
      %475 = vmatpush.msra.mxu0 0.0
      %v476 = vand.u32 %v359, 4294901760
      %v477 = vsub.f32 %v359, %v476
      %v478 = vand.u32 %v477, 4294901760
      %479 = vmatpush.msra.mxu0 %v478
      %v480 = vand.u32 %v193, 4294901760
      %481 = vmatmul.f32.gmra.mxu0 %v480
      %v482 = vpop.f32.mrf.mxu0
      %v483 = vadd.f32 %v459, %v482
      %484 = vdwg.mxu0
      %485 = vmatpush.msra.mxu0 0.0
      %486 = vmatpush.msra.mxu0 0.0
      %487 = vmatpush.msra.mxu0 0.0
      %488 = vmatpush.msra.mxu0 0.0
      %489 = vmatpush.msra.mxu0 0.0
      %490 = vmatpush.msra.mxu0 0.0
      %491 = vmatpush.msra.mxu0 0.0
      %492 = vmatpush.msra.mxu0 0.0
      %493 = vmatpush.msra.mxu0 0.0
      %494 = vmatpush.msra.mxu0 0.0
      %495 = vmatpush.msra.mxu0 0.0
      %496 = vmatpush.msra.mxu0 0.0
      %497 = vmatpush.msra.mxu0 0.0
      %498 = vmatpush.msra.mxu0 0.0
      %499 = vmatpush.msra.mxu0 0.0
      %v500 = vand.u32 %v359, 4294901760
      %501 = vmatpush.msra.mxu0 %v500
      %v502 = vand.u32 %v193, 4294901760
      %503 = vmatmul.f32.gmra.mxu0 %v502
      %v504 = vpop.f32.mrf.mxu0
      %v505 = vadd.f32 %v483, %v504
      %506 = vdwg.mxu0
      %v507 = vmul.f32 %v505, %v505
      %v508 = vadd.f32 %v344, %v507
      %v509 = vld [vmem:[%s165 + $0x2] sm:$0x1]
      %v510 = vld [vmem:[%s165 + $0x6] sm:$0x1]
      %v511 = vld [vmem:[%s165 + $0xa] sm:$0x1]
      %v512 = vld [vmem:[%s165 + $0xe] sm:$0x1]
      %v517 = vrot.slane %v510, 7
      %v518 = vsel %vm183, %v517, %v509
      %v519 = vrot.slane %v511, 6
      %v520 = vsel %vm186, %v519, %v518
      %v521 = vrot.slane %v512, 5
      %v522 = vsel %vm189, %v521, %v520
      %v523 = vsel %vm195, %v522, 0
      %525 = vmatpush.msra.mxu0 0.0
      %526 = vmatpush.msra.mxu0 0.0
      %527 = vmatpush.msra.mxu0 0.0
      %528 = vmatpush.msra.mxu0 0.0
      %529 = vmatpush.msra.mxu0 0.0
      %530 = vmatpush.msra.mxu0 0.0
      %531 = vmatpush.msra.mxu0 0.0
      %532 = vmatpush.msra.mxu0 0.0
      %533 = vmatpush.msra.mxu0 0.0
      %534 = vmatpush.msra.mxu0 0.0
      %535 = vmatpush.msra.mxu0 0.0
      %536 = vmatpush.msra.mxu0 0.0
      %537 = vmatpush.msra.mxu0 0.0
      %538 = vmatpush.msra.mxu0 0.0
      %539 = vmatpush.msra.mxu0 0.0
      %v540 = vand.u32 %v523, 4294901760
      %541 = vmatpush.msra.mxu0 %v540
      %v542 = vand.u32 %v193, 4294901760
      %v543 = vsub.f32 %v193, %v542
      %v544 = vand.u32 %v543, 4294901760
      %v545 = vsub.f32 %v543, %v544
      %v546 = vand.u32 %v545, 4294901760
      %547 = vmatmul.f32.gmra.mxu0 %v546
      %v548 = vpop.f32.mrf.mxu0
      %v549 = vadd.f32 0.0, %v548
      %550 = vdwg.mxu0
      %551 = vmatpush.msra.mxu0 0.0
      %552 = vmatpush.msra.mxu0 0.0
      %553 = vmatpush.msra.mxu0 0.0
      %554 = vmatpush.msra.mxu0 0.0
      %555 = vmatpush.msra.mxu0 0.0
      %556 = vmatpush.msra.mxu0 0.0
      %557 = vmatpush.msra.mxu0 0.0
      %558 = vmatpush.msra.mxu0 0.0
      %559 = vmatpush.msra.mxu0 0.0
      %560 = vmatpush.msra.mxu0 0.0
      %561 = vmatpush.msra.mxu0 0.0
      %562 = vmatpush.msra.mxu0 0.0
      %563 = vmatpush.msra.mxu0 0.0
      %564 = vmatpush.msra.mxu0 0.0
      %565 = vmatpush.msra.mxu0 0.0
      %v566 = vand.u32 %v523, 4294901760
      %v567 = vsub.f32 %v523, %v566
      %v568 = vand.u32 %v567, 4294901760
      %v569 = vsub.f32 %v567, %v568
      %v570 = vand.u32 %v569, 4294901760
      %571 = vmatpush.msra.mxu0 %v570
      %v572 = vand.u32 %v193, 4294901760
      %573 = vmatmul.f32.gmra.mxu0 %v572
      %v574 = vpop.f32.mrf.mxu0
      %v575 = vadd.f32 %v549, %v574
      %576 = vdwg.mxu0
      %577 = vmatpush.msra.mxu0 0.0
      %578 = vmatpush.msra.mxu0 0.0
      %579 = vmatpush.msra.mxu0 0.0
      %580 = vmatpush.msra.mxu0 0.0
      %581 = vmatpush.msra.mxu0 0.0
      %582 = vmatpush.msra.mxu0 0.0
      %583 = vmatpush.msra.mxu0 0.0
      %584 = vmatpush.msra.mxu0 0.0
      %585 = vmatpush.msra.mxu0 0.0
      %586 = vmatpush.msra.mxu0 0.0
      %587 = vmatpush.msra.mxu0 0.0
      %588 = vmatpush.msra.mxu0 0.0
      %589 = vmatpush.msra.mxu0 0.0
      %590 = vmatpush.msra.mxu0 0.0
      %591 = vmatpush.msra.mxu0 0.0
      %v592 = vand.u32 %v523, 4294901760
      %v593 = vsub.f32 %v523, %v592
      %594 = vmatpush.msra.mxu0 %v593
      %v595 = vand.u32 %v193, 4294901760
      %v596 = vsub.f32 %v193, %v595
      %597 = vmatmul.f32.gmra.mxu0 %v596
      %v598 = vpop.f32.mrf.mxu0
      %v599 = vadd.f32 %v575, %v598
      %600 = vdwg.mxu0
      %601 = vmatpush.msra.mxu0 0.0
      %602 = vmatpush.msra.mxu0 0.0
      %603 = vmatpush.msra.mxu0 0.0
      %604 = vmatpush.msra.mxu0 0.0
      %605 = vmatpush.msra.mxu0 0.0
      %606 = vmatpush.msra.mxu0 0.0
      %607 = vmatpush.msra.mxu0 0.0
      %608 = vmatpush.msra.mxu0 0.0
      %609 = vmatpush.msra.mxu0 0.0
      %610 = vmatpush.msra.mxu0 0.0
      %611 = vmatpush.msra.mxu0 0.0
      %612 = vmatpush.msra.mxu0 0.0
      %613 = vmatpush.msra.mxu0 0.0
      %614 = vmatpush.msra.mxu0 0.0
      %615 = vmatpush.msra.mxu0 0.0
      %v616 = vand.u32 %v523, 4294901760
      %617 = vmatpush.msra.mxu0 %v616
      %v618 = vand.u32 %v193, 4294901760
      %v619 = vsub.f32 %v193, %v618
      %v620 = vand.u32 %v619, 4294901760
      %621 = vmatmul.f32.gmra.mxu0 %v620
      %v622 = vpop.f32.mrf.mxu0
      %v623 = vadd.f32 %v599, %v622
      %624 = vdwg.mxu0
      %625 = vmatpush.msra.mxu0 0.0
      %626 = vmatpush.msra.mxu0 0.0
      %627 = vmatpush.msra.mxu0 0.0
      %628 = vmatpush.msra.mxu0 0.0
      %629 = vmatpush.msra.mxu0 0.0
      %630 = vmatpush.msra.mxu0 0.0
      %631 = vmatpush.msra.mxu0 0.0
      %632 = vmatpush.msra.mxu0 0.0
      %633 = vmatpush.msra.mxu0 0.0
      %634 = vmatpush.msra.mxu0 0.0
      %635 = vmatpush.msra.mxu0 0.0
      %636 = vmatpush.msra.mxu0 0.0
      %637 = vmatpush.msra.mxu0 0.0
      %638 = vmatpush.msra.mxu0 0.0
      %639 = vmatpush.msra.mxu0 0.0
      %v640 = vand.u32 %v523, 4294901760
      %v641 = vsub.f32 %v523, %v640
      %v642 = vand.u32 %v641, 4294901760
      %643 = vmatpush.msra.mxu0 %v642
      %v644 = vand.u32 %v193, 4294901760
      %645 = vmatmul.f32.gmra.mxu0 %v644
      %v646 = vpop.f32.mrf.mxu0
      %v647 = vadd.f32 %v623, %v646
      %648 = vdwg.mxu0
      %649 = vmatpush.msra.mxu0 0.0
      %650 = vmatpush.msra.mxu0 0.0
      %651 = vmatpush.msra.mxu0 0.0
      %652 = vmatpush.msra.mxu0 0.0
      %653 = vmatpush.msra.mxu0 0.0
      %654 = vmatpush.msra.mxu0 0.0
      %655 = vmatpush.msra.mxu0 0.0
      %656 = vmatpush.msra.mxu0 0.0
      %657 = vmatpush.msra.mxu0 0.0
      %658 = vmatpush.msra.mxu0 0.0
      %659 = vmatpush.msra.mxu0 0.0
      %660 = vmatpush.msra.mxu0 0.0
      %661 = vmatpush.msra.mxu0 0.0
      %662 = vmatpush.msra.mxu0 0.0
      %663 = vmatpush.msra.mxu0 0.0
      %v664 = vand.u32 %v523, 4294901760
      %665 = vmatpush.msra.mxu0 %v664
      %v666 = vand.u32 %v193, 4294901760
      %667 = vmatmul.f32.gmra.mxu0 %v666
      %v668 = vpop.f32.mrf.mxu0
      %v669 = vadd.f32 %v647, %v668
      %670 = vdwg.mxu0
      %v671 = vmul.f32 %v669, %v669
      %v672 = vadd.f32 %v508, %v671
      %v673 = vrsqrt.pop %v672
      %v674 = vmul.f32 %v673, %v672
      %v675 = vmul.f32 %v674, %v673
      %v676 = vmul.f32 0.5, %v675
      %v677 = vsub.f32 1.5, %v676
      %v678 = vmul.f32 %v673, %v677
      %v679 = vmul.f32 %v672, %v678
      %vm680 = vcmp.eq.f32.partialorder %v672, inf
      %v681 = vsel %vm680, %v672, %v679
      %vm682 = vcmp.eq.f32.partialorder %v672, 0.0
      %v683 = vand.u32 %v672, 2147483648
      %v684 = vsel %vm682, %v683, %v681
      %v685 = vadd.f32 %v684, 1e-08
      %vm686 = vcmask 130048
      %v687 = vsel %vm686, %v685, 0.0
      %688 = vadd.xlane.f32.xlu0 %v687
      %v689 = vpop.xlane.xlu0 %688
      %v690 = vmul.f32 %v685, %v685
      %v691 = vsel %vm686, %v690, 0.0
      %692 = vadd.xlane.f32.xlu0 %v691
      %v693 = vpop.xlane.xlu0 %692
      %vm694 = vcmask 7168
      %v695 = vsel %vm694, %v689, %v693
      %vm696 = vcmask 15360
      %697 = vst.msk [vmem:[%s172] sm:$0xff] %vm696, %v695
      %p698 = scmp.lt.s32.totalorder %s17, 1
      %s699 = scalar_select %p698, %s17, 1
      %p700 = scmp.lt.s32.totalorder %s18, 0
      %s701 = scalar_select %p700, %s18, 0
      %s702 = sadd.s32 %s701, %s699
      %s703 = smul.addr %s702, 8
      %s704 = scalar_lea.vmem %s2, %s703
      // Predicated region
      $region29: #{vn_linear_and_leaky_relu.2} parent=27 // pred_check
        %p705 = pneg %p94
      $region30: #{vn_linear_and_leaky_relu.2} parent=27 // pred_check_branch
        %707 = sbr.rel (%p705) target = $region32
      $region31: #{vn_linear_and_leaky_relu.2} parent=27 // pred_region
        _
      $region32: #{vn_linear_and_leaky_relu.2} parent=27 // pred_fallthru
        _
    $region28: #{vn_linear_and_leaky_relu.2} parent=5 // pred_fallthru
      _
    %p708 = scmp.le.s32.totalorder 2, %s8
    // Predicated region
    $region33: #{vn_linear_and_leaky_relu.2} parent=5 // pred_check
      %p709 = pneg %p708
    $region34: #{vn_linear_and_leaky_relu.2} parent=5 // pred_check_branch
      %711 = sbr.rel (%p709) target = $region36
    $region35: #{vn_linear_and_leaky_relu.2} parent=5 // pred_region
      %s712 = ssub.s32 %s8, 2
      // Predicated region
      $region37: #{vn_linear_and_leaky_relu.2} parent=35 // pred_check
        %p713 = pneg %p100
      $region38: #{vn_linear_and_leaky_relu.2} parent=35 // pred_check_branch
        %715 = sbr.rel (%p713) target = $region40
      $region39: #{vn_linear_and_leaky_relu.2} parent=35 // pred_region
        %p716 = scmp.lt.s32.totalorder %s19, 1
        %s717 = scalar_select %p716, %s19, 1
        %p718 = scmp.lt.s32.totalorder %s20, 0
        %s719 = scalar_select %p718, %s20, 0
        %s720 = sadd.s32 %s719, %s717
        %s721 = smul.addr %s720, 8
        %s722 = scalar_lea.vmem %s2, %s721
      $region40: #{vn_linear_and_leaky_relu.2} parent=35 // pred_fallthru
        _
    $region36: #{vn_linear_and_leaky_relu.2} parent=5 // pred_fallthru
      _
  $region6: #{vn_linear_and_leaky_relu.2} parent=0 // loop_footer
    %s12 = sadd.s32 1, %s8
  $region7: #{vn_linear_and_leaky_relu.2} parent=0 // loop_footer_branch
    %7 = sbr.rel target = $region3
  $region8: #{vn_linear_and_leaky_relu.2} parent=0 // loop_exit
    _

// kernel: vn_linear_and_leaky_relu.3
$region0: #{vn_linear_and_leaky_relu.3}
  #allocation0 [shape = 'u32[]', space=smem, size = 0x4, offset = 0x4, fixed_abs, tag = 'smem constant byte address 0x4 - core index']
  #allocation1 [shape = 'u32[72,128]{1,0:T(1,128)}', space=vmem, size = 0x9000, scoped, tag = 'internal scratch']
  %s0 = inlined_call_operand.vmem [shape: f32[2,4,3,16], index: 0, kind: input, shape index: {}]
  %s1 = inlined_call_operand.vmem [shape: f32[8,4], index: 1, kind: input, shape index: {}]
  %s2 = inlined_call_operand.vmem [shape: f32[8,8], index: 2, kind: input, shape index: {}]
  %s3 = inlined_call_operand.vmem [shape: f32[8,1], index: 3, kind: input, shape index: {}]
  %s4 = inlined_call_operand.vmem [shape: f32[8,1], index: 4, kind: input, shape index: {}]
  %s5 = inlined_call_operand.vmem [shape: f32[2,8,3,16], index: 5, kind: output, shape index: {}]
  %s6 = sld [smem:[#allocation0]]
  $region53: #{vn_linear_and_leaky_relu.3} parent=0
    _
  %s8 = ssub.s32 1, %s6
  %s9 = scalar_select 0, %s8, %s6
  loop: start=0, step=1, limit=4
  $region2: #{vn_linear_and_leaky_relu.3} parent=0 // loop_pre_header
    _
  $region3: #{vn_linear_and_leaky_relu.3} parent=0 // loop_header
    %s11 = sphi 0, %s15
    %p12 = scmp.ge.s32.totalorder %s11, 4
    %s18 = sphi 0, %s30
    %s19 = sphi 0, %s26
    %s20 = sphi 0, %s18
    %s21 = sphi 0, %s19
    %s22 = sphi 0, %s20
    %s23 = sphi 0, %s21
    %s35 = sphi 0, %s37
    %s38 = sphi 0, %s35
    %s39 = sphi 0, %s38
    %s55 = sphi 0, %s39
    %s59 = sphi 0, %s59
    %s61 = sphi 0, %s59
    %s62 = sphi 0, %s61
    %s76 = sphi 0, %s62
    %s80 = sphi 0, %s80
    %s82 = sphi 0, %s80
    %s83 = sphi 0, %s82
    %s97 = sphi 0, %s83
    %s101 = sphi 0, %s101
    %s103 = sphi 0, %s101
    %s104 = sphi 0, %s103
    %s118 = sphi 0, %s104
    %s122 = sphi 0, %s122
    %s124 = sphi 0, %s122
    %s125 = sphi 0, %s124
    %s139 = sphi 0, %s125
    %s147 = sphi 0, %s149
    %s150 = sphi 0, %s147
    %s151 = sphi 0, %s150
    %s167 = sphi 0, %s151
  $region4: #{vn_linear_and_leaky_relu.3} parent=0 // loop_header_branch
    %14 = sbr.rel (%p12) target = $region8
  $region5: #{vn_linear_and_leaky_relu.3} parent=0 // loop_body
    %s16 = ssub.s32 %s11, 1
    %s17 = ssub.s32 %s11, 2
    %s24 = sadd.s32 1, %s19
    %p25 = scmp.ge.s32.totalorder %s24, 1
    %s26 = scalar_select %p25, 0, %s24
    %s27 = sadd.s32 1, %s18
    %s28 = scalar_select %p25, %s27, %s18
    %p29 = scmp.ge.s32.totalorder %s28, 2
    %s30 = scalar_select %p29, 0, %s28
    %s31 = ssub.s32 %s18, %s30
    %s32 = ssub.s32 %s19, %s26
    %s33 = sor.u32 %s31, %s32
    %p34 = scmp.eq.s32.totalorder %s33, 0
    %s36 = sadd.s32 %s35, 1
    %s37 = scalar_select %p34, %s35, %s36
    %p40 = pneg %p34
    %p41 = scmp.eq.s32.totalorder %s11, 1
    %p42 = por %p40, %p41
    %p43 = scmp.ne.s32.totalorder %s35, %s38
    %p44 = scmp.eq.s32.totalorder %s11, 0
    %p45 = por %p43, %p44
    %p46 = scmp.ne.s32.totalorder %s35, %s38
    %p47 = scmp.eq.s32.totalorder %s16, 1
    %p48 = por %p46, %p47
    %p49 = scmp.ne.s32.totalorder %s38, %s39
    %p50 = scmp.eq.s32.totalorder %s16, 0
    %p51 = por %p49, %p50
    %p52 = scmp.ne.s32.totalorder %s38, %s39
    %p53 = scmp.eq.s32.totalorder %s17, 1
    %p54 = por %p52, %p53
    %p56 = scmp.ne.s32.totalorder %s39, %s55
    %p57 = scmp.eq.s32.totalorder %s17, 0
    %p58 = por %p56, %p57
    %s60 = sadd.s32 %s59, 1
    %p63 = scmp.eq.s32.totalorder %s11, 1
    %p64 = scmp.ne.s32.totalorder %s59, %s61
    %p65 = scmp.eq.s32.totalorder %s11, 0
    %p66 = por %p64, %p65
    %p67 = scmp.ne.s32.totalorder %s59, %s61
    %p68 = scmp.eq.s32.totalorder %s16, 1
    %p69 = por %p67, %p68
    %p70 = scmp.ne.s32.totalorder %s61, %s62
    %p71 = scmp.eq.s32.totalorder %s16, 0
    %p72 = por %p70, %p71
    %p73 = scmp.ne.s32.totalorder %s61, %s62
    %p74 = scmp.eq.s32.totalorder %s17, 1
    %p75 = por %p73, %p74
    %p77 = scmp.ne.s32.totalorder %s62, %s76
    %p78 = scmp.eq.s32.totalorder %s17, 0
    %p79 = por %p77, %p78
    %s81 = sadd.s32 %s80, 1
    %p84 = scmp.eq.s32.totalorder %s11, 1
    %p85 = scmp.ne.s32.totalorder %s80, %s82
    %p86 = scmp.eq.s32.totalorder %s11, 0
    %p87 = por %p85, %p86
    %p88 = scmp.ne.s32.totalorder %s80, %s82
    %p89 = scmp.eq.s32.totalorder %s16, 1
    %p90 = por %p88, %p89
    %p91 = scmp.ne.s32.totalorder %s82, %s83
    %p92 = scmp.eq.s32.totalorder %s16, 0
    %p93 = por %p91, %p92
    %p94 = scmp.ne.s32.totalorder %s82, %s83
    %p95 = scmp.eq.s32.totalorder %s17, 1
    %p96 = por %p94, %p95
    %p98 = scmp.ne.s32.totalorder %s83, %s97
    %p99 = scmp.eq.s32.totalorder %s17, 0
    %p100 = por %p98, %p99
    %s102 = sadd.s32 %s101, 1
    %p105 = scmp.eq.s32.totalorder %s11, 1
    %p106 = scmp.ne.s32.totalorder %s101, %s103
    %p107 = scmp.eq.s32.totalorder %s11, 0
    %p108 = por %p106, %p107
    %p109 = scmp.ne.s32.totalorder %s101, %s103
    %p110 = scmp.eq.s32.totalorder %s16, 1
    %p111 = por %p109, %p110
    %p112 = scmp.ne.s32.totalorder %s103, %s104
    %p113 = scmp.eq.s32.totalorder %s16, 0
    %p114 = por %p112, %p113
    %p115 = scmp.ne.s32.totalorder %s103, %s104
    %p116 = scmp.eq.s32.totalorder %s17, 1
    %p117 = por %p115, %p116
    %p119 = scmp.ne.s32.totalorder %s104, %s118
    %p120 = scmp.eq.s32.totalorder %s17, 0
    %p121 = por %p119, %p120
    %s123 = sadd.s32 %s122, 1
    %p126 = scmp.eq.s32.totalorder %s11, 1
    %p127 = scmp.ne.s32.totalorder %s122, %s124
    %p128 = scmp.eq.s32.totalorder %s11, 0
    %p129 = por %p127, %p128
    %p130 = scmp.ne.s32.totalorder %s122, %s124
    %p131 = scmp.eq.s32.totalorder %s16, 1
    %p132 = por %p130, %p131
    %p133 = scmp.ne.s32.totalorder %s124, %s125
    %p134 = scmp.eq.s32.totalorder %s16, 0
    %p135 = por %p133, %p134
    %p136 = scmp.ne.s32.totalorder %s124, %s125
    %p137 = scmp.eq.s32.totalorder %s17, 1
    %p138 = por %p136, %p137
    %p140 = scmp.ne.s32.totalorder %s125, %s139
    %p141 = scmp.eq.s32.totalorder %s17, 0
    %p142 = por %p140, %p141
    %s143 = ssub.s32 %s18, %s30
    %s144 = ssub.s32 %s19, %s26
    %s145 = sor.u32 %s143, %s144
    %p146 = scmp.eq.s32.totalorder %s145, 0
    %s148 = sadd.s32 %s147, 1
    %s149 = scalar_select %p146, %s147, %s148
    %p152 = pneg %p146
    %p153 = scmp.eq.s32.totalorder %s11, 1
    %p154 = por %p152, %p153
    %p155 = scmp.ne.s32.totalorder %s147, %s150
    %p156 = scmp.eq.s32.totalorder %s11, 0
    %p157 = por %p155, %p156
    %p158 = scmp.ne.s32.totalorder %s147, %s150
    %p159 = scmp.eq.s32.totalorder %s16, 1
    %p160 = por %p158, %p159
    %p161 = scmp.ne.s32.totalorder %s150, %s151
    %p162 = scmp.eq.s32.totalorder %s16, 0
    %p163 = por %p161, %p162
    %p164 = scmp.ne.s32.totalorder %s150, %s151
    %p165 = scmp.eq.s32.totalorder %s17, 1
    %p166 = por %p164, %p165
    %p168 = scmp.ne.s32.totalorder %s151, %s167
    %p169 = scmp.eq.s32.totalorder %s17, 0
    %p170 = por %p168, %p169
    %p171 = scmp.le.s32.totalorder 1, %s11
    %p172 = scmp.lt.s32.totalorder %s11, 3
    %p173 = pnand %p171, %p172
    %p174 = pneg %p173
    // Predicated region
    $region9: #{vn_linear_and_leaky_relu.3} parent=5 // pred_check
      _
    $region10: #{vn_linear_and_leaky_relu.3} parent=5 // pred_check_branch
      %176 = sbr.rel (%p173) target = $region12
    $region11: #{vn_linear_and_leaky_relu.3} parent=5 // pred_region
      %s177 = ssub.s32 %s11, 1
      // Predicated region
      $region13: #{vn_linear_and_leaky_relu.3} parent=11 // pred_check
        %p178 = pneg %p72
      $region14: #{vn_linear_and_leaky_relu.3} parent=11 // pred_check_branch
        %180 = sbr.rel (%p178) target = $region16
      $region15: #{vn_linear_and_leaky_relu.3} parent=11 // pred_region
        _
      $region16: #{vn_linear_and_leaky_relu.3} parent=11 // pred_fallthru
        _
      // Predicated region
      $region17: #{vn_linear_and_leaky_relu.3} parent=11 // pred_check
        %p181 = pneg %p93
      $region18: #{vn_linear_and_leaky_relu.3} parent=11 // pred_check_branch
        %183 = sbr.rel (%p181) target = $region20
      $region19: #{vn_linear_and_leaky_relu.3} parent=11 // pred_region
        _
      $region20: #{vn_linear_and_leaky_relu.3} parent=11 // pred_fallthru
        _
      // Predicated region
      $region21: #{vn_linear_and_leaky_relu.3} parent=11 // pred_check
        %p184 = pneg %p114
      $region22: #{vn_linear_and_leaky_relu.3} parent=11 // pred_check_branch
        %186 = sbr.rel (%p184) target = $region24
      $region23: #{vn_linear_and_leaky_relu.3} parent=11 // pred_region
        _
      $region24: #{vn_linear_and_leaky_relu.3} parent=11 // pred_fallthru
        _
      // Predicated region
      $region25: #{vn_linear_and_leaky_relu.3} parent=11 // pred_check
        %p187 = pneg %p135
      $region26: #{vn_linear_and_leaky_relu.3} parent=11 // pred_check_branch
        %189 = sbr.rel (%p187) target = $region28
      $region27: #{vn_linear_and_leaky_relu.3} parent=11 // pred_region
        _
      $region28: #{vn_linear_and_leaky_relu.3} parent=11 // pred_fallthru
        _
    $region12: #{vn_linear_and_leaky_relu.3} parent=5 // pred_fallthru
      _
    %p190 = scmp.lt.s32.totalorder %s11, 2
    // Predicated region
    $region29: #{vn_linear_and_leaky_relu.3} parent=5 // pred_check
      %p191 = pneg %p190
    $region30: #{vn_linear_and_leaky_relu.3} parent=5 // pred_check_branch
      %193 = sbr.rel (%p191) target = $region32
    $region31: #{vn_linear_and_leaky_relu.3} parent=5 // pred_region
      // Predicated region
      $region33: #{vn_linear_and_leaky_relu.3} parent=31 // pred_check
        %p194 = pneg %p45
      $region34: #{vn_linear_and_leaky_relu.3} parent=31 // pred_check_branch
        %196 = sbr.rel (%p194) target = $region36
      $region35: #{vn_linear_and_leaky_relu.3} parent=31 // pred_region
        %p197 = scmp.lt.s32.totalorder %s18, 1
        %s198 = scalar_select %p197, %s18, 1
        %p199 = scmp.lt.s32.totalorder %s19, 0
        %s200 = scalar_select %p199, %s19, 0
        %s201 = smul.addr %s198, 4
        %s202 = sadd.s32 %s200, %s201
        %s203 = smul.addr %s202, 4
        %s204 = scalar_lea.vmem %s0, %s203
      $region36: #{vn_linear_and_leaky_relu.3} parent=31 // pred_fallthru
        _
    $region32: #{vn_linear_and_leaky_relu.3} parent=5 // pred_fallthru
      _
    %p205 = scmp.le.s32.totalorder 1, %s11
    %p206 = scmp.lt.s32.totalorder %s11, 3
    %p207 = pnand %p205, %p206
    %p208 = pneg %p207
    // Predicated region
    $region37: #{vn_linear_and_leaky_relu.3} parent=5 // pred_check
      _
    $region38: #{vn_linear_and_leaky_relu.3} parent=5 // pred_check_branch
      %210 = sbr.rel (%p207) target = $region40
    $region39: #{vn_linear_and_leaky_relu.3} parent=5 // pred_region
      %s211 = ssub.s32 %s11, 1
      %p212 = scmp.lt.s32.totalorder %s20, 1
      %s213 = scalar_select %p212, %s20, 1
      %p214 = scmp.lt.s32.totalorder %s21, 0
      %s215 = scalar_select %p214, %s21, 0
      %s216 = smul.addr %s213, 4
      %s217 = sadd.s32 %s215, %s216
      %s218 = smul.addr %s217, 4
      %s219 = scalar_lea.vmem %s0, %s218
      %p220 = pneg %p51
      %p221 = pneg %p48
      %p222 = pneg %p72
      %p223 = pneg %p69
      %p224 = pneg %p93
      %p225 = pneg %p90
      %p226 = pneg %p114
      %p227 = pneg %p111
      %p228 = pneg %p135
      %p229 = pneg %p132
      %p230 = pneg %p163
      %p231 = pneg %p160
      %p232 = scmp.lt.s32.totalorder %s20, 1
      %s233 = scalar_select %p232, %s20, 1
      %p234 = scmp.lt.s32.totalorder %s21, 0
      %s235 = scalar_select %p234, %s21, 0
      %s236 = smul.addr %s233, 8
      %s237 = sadd.s32 %s235, %s236
      %s238 = smul.addr %s237, 4
      %s239 = scalar_lea.vmem %s5, %s238
      %p240 = scmp.lt.s32.totalorder %s20, 1
      %s241 = scalar_select %p240, %s20, 1
      %p242 = scmp.lt.s32.totalorder %s21, 0
      %s243 = scalar_select %p242, %s21, 0
      %s244 = smul.addr %s241, 4
      %s245 = sadd.s32 %s243, %s244
      %s246 = smul.addr %s245, 4
      %s247 = scalar_lea.vmem %s0, %s246
      %p248 = scmp.lt.s32.totalorder %s20, 1
      %s249 = scalar_select %p248, %s20, 1
      %p250 = scmp.lt.s32.totalorder %s21, 0
      %s251 = scalar_select %p250, %s21, 0
      %s252 = smul.addr %s249, 8
      %s253 = sadd.s32 %s251, %s252
      %s254 = smul.addr %s253, 4
      %s255 = scalar_lea.vmem %s5, %s254
      %v256 = vld [vmem:[%s1] sm:$0xff]
      %v257 = vld [vmem:[%s2] sm:$0xff]
      %v258 = vld [vmem:[%s247] sm:$0x1]
      %v259 = vld [vmem:[%s247 + $0x4] sm:$0x1]
      %v260 = vld [vmem:[%s247 + $0x8] sm:$0x1]
      %v261 = vld [vmem:[%s247 + $0xc] sm:$0x1]
      %v266 = vrot.slane %v259, 7
      %vm267 = vcmask 1041409
      %v268 = vsel %vm267, %v266, %v258
      %v269 = vrot.slane %v260, 6
      %vm270 = vcmask 1042434
      %v271 = vsel %vm270, %v269, %v268
      %v272 = vrot.slane %v261, 5
      %vm273 = vcmask 1043459
      %v274 = vsel %vm273, %v272, %v271
      %vm275 = vcmask 31744
      %v277 = vsel %vm275, %v256, 0
      %vm279 = vcmask 1043456
      %v280 = vsel %vm279, %v274, 0
      %282 = vmatpush.msra.mxu0 0.0
      %283 = vmatpush.msra.mxu0 0.0
      %284 = vmatpush.msra.mxu0 0.0
      %285 = vmatpush.msra.mxu0 0.0
      %286 = vmatpush.msra.mxu0 0.0
      %287 = vmatpush.msra.mxu0 0.0
      %288 = vmatpush.msra.mxu0 0.0
      %289 = vmatpush.msra.mxu0 0.0
      %290 = vmatpush.msra.mxu0 0.0
      %291 = vmatpush.msra.mxu0 0.0
      %292 = vmatpush.msra.mxu0 0.0
      %293 = vmatpush.msra.mxu0 0.0
      %294 = vmatpush.msra.mxu0 0.0
      %295 = vmatpush.msra.mxu0 0.0
      %296 = vmatpush.msra.mxu0 0.0
      %v297 = vand.u32 %v280, 4294901760
      %298 = vmatpush.msra.mxu0 %v297
      %v299 = vand.u32 %v277, 4294901760
      %v300 = vsub.f32 %v277, %v299
      %v301 = vand.u32 %v300, 4294901760
      %v302 = vsub.f32 %v300, %v301
      %v303 = vand.u32 %v302, 4294901760
      %304 = vmatmul.f32.gmra.mxu0 %v303
      %v305 = vpop.f32.mrf.mxu0
      %v306 = vadd.f32 0.0, %v305
      %307 = vdwg.mxu0
      %308 = vmatpush.msra.mxu0 0.0
      %309 = vmatpush.msra.mxu0 0.0
      %310 = vmatpush.msra.mxu0 0.0
      %311 = vmatpush.msra.mxu0 0.0
      %312 = vmatpush.msra.mxu0 0.0
      %313 = vmatpush.msra.mxu0 0.0
      %314 = vmatpush.msra.mxu0 0.0
      %315 = vmatpush.msra.mxu0 0.0
      %316 = vmatpush.msra.mxu0 0.0
      %317 = vmatpush.msra.mxu0 0.0
      %318 = vmatpush.msra.mxu0 0.0
      %319 = vmatpush.msra.mxu0 0.0
      %320 = vmatpush.msra.mxu0 0.0
      %321 = vmatpush.msra.mxu0 0.0
      %322 = vmatpush.msra.mxu0 0.0
      %v323 = vand.u32 %v280, 4294901760
      %v324 = vsub.f32 %v280, %v323
      %v325 = vand.u32 %v324, 4294901760
      %v326 = vsub.f32 %v324, %v325
      %v327 = vand.u32 %v326, 4294901760
      %328 = vmatpush.msra.mxu0 %v327
      %v329 = vand.u32 %v277, 4294901760
      %330 = vmatmul.f32.gmra.mxu0 %v329
      %v331 = vpop.f32.mrf.mxu0
      %v332 = vadd.f32 %v306, %v331
      %333 = vdwg.mxu0
      %334 = vmatpush.msra.mxu0 0.0
      %335 = vmatpush.msra.mxu0 0.0
      %336 = vmatpush.msra.mxu0 0.0
      %337 = vmatpush.msra.mxu0 0.0
      %338 = vmatpush.msra.mxu0 0.0
      %339 = vmatpush.msra.mxu0 0.0
      %340 = vmatpush.msra.mxu0 0.0
      %341 = vmatpush.msra.mxu0 0.0
      %342 = vmatpush.msra.mxu0 0.0
      %343 = vmatpush.msra.mxu0 0.0
      %344 = vmatpush.msra.mxu0 0.0
      %345 = vmatpush.msra.mxu0 0.0
      %346 = vmatpush.msra.mxu0 0.0
      %347 = vmatpush.msra.mxu0 0.0
      %348 = vmatpush.msra.mxu0 0.0
      %v349 = vand.u32 %v280, 4294901760
      %v350 = vsub.f32 %v280, %v349
      %351 = vmatpush.msra.mxu0 %v350
      %v352 = vand.u32 %v277, 4294901760
      %v353 = vsub.f32 %v277, %v352
      %354 = vmatmul.f32.gmra.mxu0 %v353
      %v355 = vpop.f32.mrf.mxu0
      %v356 = vadd.f32 %v332, %v355
      %357 = vdwg.mxu0
      %358 = vmatpush.msra.mxu0 0.0
      %359 = vmatpush.msra.mxu0 0.0
      %360 = vmatpush.msra.mxu0 0.0
      %361 = vmatpush.msra.mxu0 0.0
      %362 = vmatpush.msra.mxu0 0.0
      %363 = vmatpush.msra.mxu0 0.0
      %364 = vmatpush.msra.mxu0 0.0
      %365 = vmatpush.msra.mxu0 0.0
      %366 = vmatpush.msra.mxu0 0.0
      %367 = vmatpush.msra.mxu0 0.0
      %368 = vmatpush.msra.mxu0 0.0
      %369 = vmatpush.msra.mxu0 0.0
      %370 = vmatpush.msra.mxu0 0.0
      %371 = vmatpush.msra.mxu0 0.0
      %372 = vmatpush.msra.mxu0 0.0
      %v373 = vand.u32 %v280, 4294901760
      %374 = vmatpush.msra.mxu0 %v373
      %v375 = vand.u32 %v277, 4294901760
      %v376 = vsub.f32 %v277, %v375
      %v377 = vand.u32 %v376, 4294901760
      %378 = vmatmul.f32.gmra.mxu0 %v377
      %v379 = vpop.f32.mrf.mxu0
      %v380 = vadd.f32 %v356, %v379
      %381 = vdwg.mxu0
      %382 = vmatpush.msra.mxu0 0.0
      %383 = vmatpush.msra.mxu0 0.0
      %384 = vmatpush.msra.mxu0 0.0
      %385 = vmatpush.msra.mxu0 0.0
      %386 = vmatpush.msra.mxu0 0.0
      %387 = vmatpush.msra.mxu0 0.0
      %388 = vmatpush.msra.mxu0 0.0
      %389 = vmatpush.msra.mxu0 0.0
      %390 = vmatpush.msra.mxu0 0.0
      %391 = vmatpush.msra.mxu0 0.0
      %392 = vmatpush.msra.mxu0 0.0
      %393 = vmatpush.msra.mxu0 0.0
      %394 = vmatpush.msra.mxu0 0.0
      %395 = vmatpush.msra.mxu0 0.0
      %396 = vmatpush.msra.mxu0 0.0
      %v397 = vand.u32 %v280, 4294901760
      %v398 = vsub.f32 %v280, %v397
      %v399 = vand.u32 %v398, 4294901760
      %400 = vmatpush.msra.mxu0 %v399
      %v401 = vand.u32 %v277, 4294901760
      %402 = vmatmul.f32.gmra.mxu0 %v401
      %v403 = vpop.f32.mrf.mxu0
      %v404 = vadd.f32 %v380, %v403
      %405 = vdwg.mxu0
      %406 = vmatpush.msra.mxu0 0.0
      %407 = vmatpush.msra.mxu0 0.0
      %408 = vmatpush.msra.mxu0 0.0
      %409 = vmatpush.msra.mxu0 0.0
      %410 = vmatpush.msra.mxu0 0.0
      %411 = vmatpush.msra.mxu0 0.0
      %412 = vmatpush.msra.mxu0 0.0
      %413 = vmatpush.msra.mxu0 0.0
      %414 = vmatpush.msra.mxu0 0.0
      %415 = vmatpush.msra.mxu0 0.0
      %416 = vmatpush.msra.mxu0 0.0
      %417 = vmatpush.msra.mxu0 0.0
      %418 = vmatpush.msra.mxu0 0.0
      %419 = vmatpush.msra.mxu0 0.0
      %420 = vmatpush.msra.mxu0 0.0
      %v421 = vand.u32 %v280, 4294901760
      %422 = vmatpush.msra.mxu0 %v421
      %v423 = vand.u32 %v277, 4294901760
      %424 = vmatmul.f32.gmra.mxu0 %v423
      %v425 = vpop.f32.mrf.mxu0
      %v426 = vadd.f32 %v404, %v425
      %427 = vdwg.mxu0
      %v428 = vmul.f32 %v426, %v426
      %v429 = vld [vmem:[%s247 + $0x1] sm:$0x1]
      %v430 = vld [vmem:[%s247 + $0x5] sm:$0x1]
      %v431 = vld [vmem:[%s247 + $0x9] sm:$0x1]
      %v432 = vld [vmem:[%s247 + $0xd] sm:$0x1]
      %v437 = vrot.slane %v430, 7
      %v438 = vsel %vm267, %v437, %v429
      %v439 = vrot.slane %v431, 6
      %v440 = vsel %vm270, %v439, %v438
      %v441 = vrot.slane %v432, 5
      %v442 = vsel %vm273, %v441, %v440
      %v443 = vsel %vm279, %v442, 0
      %445 = vmatpush.msra.mxu0 0.0
      %446 = vmatpush.msra.mxu0 0.0
      %447 = vmatpush.msra.mxu0 0.0
      %448 = vmatpush.msra.mxu0 0.0
      %449 = vmatpush.msra.mxu0 0.0
      %450 = vmatpush.msra.mxu0 0.0
      %451 = vmatpush.msra.mxu0 0.0
      %452 = vmatpush.msra.mxu0 0.0
      %453 = vmatpush.msra.mxu0 0.0
      %454 = vmatpush.msra.mxu0 0.0
      %455 = vmatpush.msra.mxu0 0.0
      %456 = vmatpush.msra.mxu0 0.0
      %457 = vmatpush.msra.mxu0 0.0
      %458 = vmatpush.msra.mxu0 0.0
      %459 = vmatpush.msra.mxu0 0.0
      %v460 = vand.u32 %v443, 4294901760
      %461 = vmatpush.msra.mxu0 %v460
      %v462 = vand.u32 %v277, 4294901760
      %v463 = vsub.f32 %v277, %v462
      %v464 = vand.u32 %v463, 4294901760
      %v465 = vsub.f32 %v463, %v464
      %v466 = vand.u32 %v465, 4294901760
      %467 = vmatmul.f32.gmra.mxu0 %v466
      %v468 = vpop.f32.mrf.mxu0
      %v469 = vadd.f32 0.0, %v468
      %470 = vdwg.mxu0
      %471 = vmatpush.msra.mxu0 0.0
      %472 = vmatpush.msra.mxu0 0.0
      %473 = vmatpush.msra.mxu0 0.0
      %474 = vmatpush.msra.mxu0 0.0
      %475 = vmatpush.msra.mxu0 0.0
      %476 = vmatpush.msra.mxu0 0.0
      %477 = vmatpush.msra.mxu0 0.0
      %478 = vmatpush.msra.mxu0 0.0
      %479 = vmatpush.msra.mxu0 0.0
      %480 = vmatpush.msra.mxu0 0.0
      %481 = vmatpush.msra.mxu0 0.0
      %482 = vmatpush.msra.mxu0 0.0
      %483 = vmatpush.msra.mxu0 0.0
      %484 = vmatpush.msra.mxu0 0.0
      %485 = vmatpush.msra.mxu0 0.0
      %v486 = vand.u32 %v443, 4294901760
      %v487 = vsub.f32 %v443, %v486
      %v488 = vand.u32 %v487, 4294901760
      %v489 = vsub.f32 %v487, %v488
      %v490 = vand.u32 %v489, 4294901760
      %491 = vmatpush.msra.mxu0 %v490
      %v492 = vand.u32 %v277, 4294901760
      %493 = vmatmul.f32.gmra.mxu0 %v492
      %v494 = vpop.f32.mrf.mxu0
      %v495 = vadd.f32 %v469, %v494
      %496 = vdwg.mxu0
      %497 = vmatpush.msra.mxu0 0.0
      %498 = vmatpush.msra.mxu0 0.0
      %499 = vmatpush.msra.mxu0 0.0
      %500 = vmatpush.msra.mxu0 0.0
      %501 = vmatpush.msra.mxu0 0.0
      %502 = vmatpush.msra.mxu0 0.0
      %503 = vmatpush.msra.mxu0 0.0
      %504 = vmatpush.msra.mxu0 0.0
      %505 = vmatpush.msra.mxu0 0.0
      %506 = vmatpush.msra.mxu0 0.0
      %507 = vmatpush.msra.mxu0 0.0
      %508 = vmatpush.msra.mxu0 0.0
      %509 = vmatpush.msra.mxu0 0.0
      %510 = vmatpush.msra.mxu0 0.0
      %511 = vmatpush.msra.mxu0 0.0
      %v512 = vand.u32 %v443, 4294901760
      %v513 = vsub.f32 %v443, %v512
      %514 = vmatpush.msra.mxu0 %v513
      %v515 = vand.u32 %v277, 4294901760
      %v516 = vsub.f32 %v277, %v515
      %517 = vmatmul.f32.gmra.mxu0 %v516
      %v518 = vpop.f32.mrf.mxu0
      %v519 = vadd.f32 %v495, %v518
      %520 = vdwg.mxu0
      %521 = vmatpush.msra.mxu0 0.0
      %522 = vmatpush.msra.mxu0 0.0
      %523 = vmatpush.msra.mxu0 0.0
      %524 = vmatpush.msra.mxu0 0.0
      %525 = vmatpush.msra.mxu0 0.0
      %526 = vmatpush.msra.mxu0 0.0
      %527 = vmatpush.msra.mxu0 0.0
      %528 = vmatpush.msra.mxu0 0.0
      %529 = vmatpush.msra.mxu0 0.0
      %530 = vmatpush.msra.mxu0 0.0
      %531 = vmatpush.msra.mxu0 0.0
      %532 = vmatpush.msra.mxu0 0.0
      %533 = vmatpush.msra.mxu0 0.0
      %534 = vmatpush.msra.mxu0 0.0
      %535 = vmatpush.msra.mxu0 0.0
      %v536 = vand.u32 %v443, 4294901760
      %537 = vmatpush.msra.mxu0 %v536
      %v538 = vand.u32 %v277, 4294901760
      %v539 = vsub.f32 %v277, %v538
      %v540 = vand.u32 %v539, 4294901760
      %541 = vmatmul.f32.gmra.mxu0 %v540
      %v542 = vpop.f32.mrf.mxu0
      %v543 = vadd.f32 %v519, %v542
      %544 = vdwg.mxu0
      %545 = vmatpush.msra.mxu0 0.0
      %546 = vmatpush.msra.mxu0 0.0
      %547 = vmatpush.msra.mxu0 0.0
      %548 = vmatpush.msra.mxu0 0.0
      %549 = vmatpush.msra.mxu0 0.0
      %550 = vmatpush.msra.mxu0 0.0
      %551 = vmatpush.msra.mxu0 0.0
      %552 = vmatpush.msra.mxu0 0.0
      %553 = vmatpush.msra.mxu0 0.0
      %554 = vmatpush.msra.mxu0 0.0
      %555 = vmatpush.msra.mxu0 0.0
      %556 = vmatpush.msra.mxu0 0.0
      %557 = vmatpush.msra.mxu0 0.0
      %558 = vmatpush.msra.mxu0 0.0
      %559 = vmatpush.msra.mxu0 0.0
      %v560 = vand.u32 %v443, 4294901760
      %v561 = vsub.f32 %v443, %v560
      %v562 = vand.u32 %v561, 4294901760
      %563 = vmatpush.msra.mxu0 %v562
      %v564 = vand.u32 %v277, 4294901760
      %565 = vmatmul.f32.gmra.mxu0 %v564
      %v566 = vpop.f32.mrf.mxu0
      %v567 = vadd.f32 %v543, %v566
      %568 = vdwg.mxu0
      %569 = vmatpush.msra.mxu0 0.0
      %570 = vmatpush.msra.mxu0 0.0
      %571 = vmatpush.msra.mxu0 0.0
      %572 = vmatpush.msra.mxu0 0.0
      %573 = vmatpush.msra.mxu0 0.0
      %574 = vmatpush.msra.mxu0 0.0
      %575 = vmatpush.msra.mxu0 0.0
      %576 = vmatpush.msra.mxu0 0.0
      %577 = vmatpush.msra.mxu0 0.0
      %578 = vmatpush.msra.mxu0 0.0
      %579 = vmatpush.msra.mxu0 0.0
      %580 = vmatpush.msra.mxu0 0.0
      %581 = vmatpush.msra.mxu0 0.0
      %582 = vmatpush.msra.mxu0 0.0
      %583 = vmatpush.msra.mxu0 0.0
      %v584 = vand.u32 %v443, 4294901760
      %585 = vmatpush.msra.mxu0 %v584
      %v586 = vand.u32 %v277, 4294901760
      %587 = vmatmul.f32.gmra.mxu0 %v586
      %v588 = vpop.f32.mrf.mxu0
      %v589 = vadd.f32 %v567, %v588
      %590 = vdwg.mxu0
      %v591 = vmul.f32 %v589, %v589
      %v592 = vadd.f32 %v428, %v591
      %v593 = vld [vmem:[%s247 + $0x2] sm:$0x1]
      %v594 = vld [vmem:[%s247 + $0x6] sm:$0x1]
      %v595 = vld [vmem:[%s247 + $0xa] sm:$0x1]
      %v596 = vld [vmem:[%s247 + $0xe] sm:$0x1]
      %v601 = vrot.slane %v594, 7
      %v602 = vsel %vm267, %v601, %v593
      %v603 = vrot.slane %v595, 6
      %v604 = vsel %vm270, %v603, %v602
      %v605 = vrot.slane %v596, 5
      %v606 = vsel %vm273, %v605, %v604
      %v607 = vsel %vm279, %v606, 0
      %609 = vmatpush.msra.mxu0 0.0
      %610 = vmatpush.msra.mxu0 0.0
      %611 = vmatpush.msra.mxu0 0.0
      %612 = vmatpush.msra.mxu0 0.0
      %613 = vmatpush.msra.mxu0 0.0
      %614 = vmatpush.msra.mxu0 0.0
      %615 = vmatpush.msra.mxu0 0.0
      %616 = vmatpush.msra.mxu0 0.0
      %617 = vmatpush.msra.mxu0 0.0
      %618 = vmatpush.msra.mxu0 0.0
      %619 = vmatpush.msra.mxu0 0.0
      %620 = vmatpush.msra.mxu0 0.0
      %621 = vmatpush.msra.mxu0 0.0
      %622 = vmatpush.msra.mxu0 0.0
      %623 = vmatpush.msra.mxu0 0.0
      %v624 = vand.u32 %v607, 4294901760
      %625 = vmatpush.msra.mxu0 %v624
      %v626 = vand.u32 %v277, 4294901760
      %v627 = vsub.f32 %v277, %v626
      %v628 = vand.u32 %v627, 4294901760
      %v629 = vsub.f32 %v627, %v628
      %v630 = vand.u32 %v629, 4294901760
      %631 = vmatmul.f32.gmra.mxu0 %v630
      %v632 = vpop.f32.mrf.mxu0
      %v633 = vadd.f32 0.0, %v632
      %634 = vdwg.mxu0
      %635 = vmatpush.msra.mxu0 0.0
      %636 = vmatpush.msra.mxu0 0.0
      %637 = vmatpush.msra.mxu0 0.0
      %638 = vmatpush.msra.mxu0 0.0
      %639 = vmatpush.msra.mxu0 0.0
      %640 = vmatpush.msra.mxu0 0.0
      %641 = vmatpush.msra.mxu0 0.0
      %642 = vmatpush.msra.mxu0 0.0
      %643 = vmatpush.msra.mxu0 0.0
      %644 = vmatpush.msra.mxu0 0.0
      %645 = vmatpush.msra.mxu0 0.0
      %646 = vmatpush.msra.mxu0 0.0
      %647 = vmatpush.msra.mxu0 0.0
      %648 = vmatpush.msra.mxu0 0.0
      %649 = vmatpush.msra.mxu0 0.0
      %v650 = vand.u32 %v607, 4294901760
      %v651 = vsub.f32 %v607, %v650
      %v652 = vand.u32 %v651, 4294901760
      %v653 = vsub.f32 %v651, %v652
      %v654 = vand.u32 %v653, 4294901760
      %655 = vmatpush.msra.mxu0 %v654
      %v656 = vand.u32 %v277, 4294901760
      %657 = vmatmul.f32.gmra.mxu0 %v656
      %v658 = vpop.f32.mrf.mxu0
      %v659 = vadd.f32 %v633, %v658
      %660 = vdwg.mxu0
      %661 = vmatpush.msra.mxu0 0.0
      %662 = vmatpush.msra.mxu0 0.0
      %663 = vmatpush.msra.mxu0 0.0
      %664 = vmatpush.msra.mxu0 0.0
      %665 = vmatpush.msra.mxu0 0.0
      %666 = vmatpush.msra.mxu0 0.0
      %667 = vmatpush.msra.mxu0 0.0
      %668 = vmatpush.msra.mxu0 0.0
      %669 = vmatpush.msra.mxu0 0.0
      %670 = vmatpush.msra.mxu0 0.0
      %671 = vmatpush.msra.mxu0 0.0
      %672 = vmatpush.msra.mxu0 0.0
      %673 = vmatpush.msra.mxu0 0.0
      %674 = vmatpush.msra.mxu0 0.0
      %675 = vmatpush.msra.mxu0 0.0
      %v676 = vand.u32 %v607, 4294901760
      %v677 = vsub.f32 %v607, %v676
      %678 = vmatpush.msra.mxu0 %v677
      %v679 = vand.u32 %v277, 4294901760
      %v680 = vsub.f32 %v277, %v679
      %681 = vmatmul.f32.gmra.mxu0 %v680
      %v682 = vpop.f32.mrf.mxu0
      %v683 = vadd.f32 %v659, %v682
      %684 = vdwg.mxu0
      %685 = vmatpush.msra.mxu0 0.0
      %686 = vmatpush.msra.mxu0 0.0
      %687 = vmatpush.msra.mxu0 0.0
      %688 = vmatpush.msra.mxu0 0.0
      %689 = vmatpush.msra.mxu0 0.0
      %690 = vmatpush.msra.mxu0 0.0
      %691 = vmatpush.msra.mxu0 0.0
      %692 = vmatpush.msra.mxu0 0.0
      %693 = vmatpush.msra.mxu0 0.0
      %694 = vmatpush.msra.mxu0 0.0
      %695 = vmatpush.msra.mxu0 0.0
      %696 = vmatpush.msra.mxu0 0.0
      %697 = vmatpush.msra.mxu0 0.0
      %698 = vmatpush.msra.mxu0 0.0
      %699 = vmatpush.msra.mxu0 0.0
      %v700 = vand.u32 %v607, 4294901760
      %701 = vmatpush.msra.mxu0 %v700
      %v702 = vand.u32 %v277, 4294901760
      %v703 = vsub.f32 %v277, %v702
      %v704 = vand.u32 %v703, 4294901760
      %705 = vmatmul.f32.gmra.mxu0 %v704
      %v706 = vpop.f32.mrf.mxu0
      %v707 = vadd.f32 %v683, %v706
      %708 = vdwg.mxu0
      %709 = vmatpush.msra.mxu0 0.0
      %710 = vmatpush.msra.mxu0 0.0
      %711 = vmatpush.msra.mxu0 0.0
      %712 = vmatpush.msra.mxu0 0.0
      %713 = vmatpush.msra.mxu0 0.0
      %714 = vmatpush.msra.mxu0 0.0
      %715 = vmatpush.msra.mxu0 0.0
      %716 = vmatpush.msra.mxu0 0.0
      %717 = vmatpush.msra.mxu0 0.0
      %718 = vmatpush.msra.mxu0 0.0
      %719 = vmatpush.msra.mxu0 0.0
      %720 = vmatpush.msra.mxu0 0.0
      %721 = vmatpush.msra.mxu0 0.0
      %722 = vmatpush.msra.mxu0 0.0
      %723 = vmatpush.msra.mxu0 0.0
      %v724 = vand.u32 %v607, 4294901760
      %v725 = vsub.f32 %v607, %v724
      %v726 = vand.u32 %v725, 4294901760
      %727 = vmatpush.msra.mxu0 %v726
      %v728 = vand.u32 %v277, 4294901760
      %729 = vmatmul.f32.gmra.mxu0 %v728
      %v730 = vpop.f32.mrf.mxu0
      %v731 = vadd.f32 %v707, %v730
      %732 = vdwg.mxu0
      %733 = vmatpush.msra.mxu0 0.0
      %734 = vmatpush.msra.mxu0 0.0
      %735 = vmatpush.msra.mxu0 0.0
      %736 = vmatpush.msra.mxu0 0.0
      %737 = vmatpush.msra.mxu0 0.0
      %738 = vmatpush.msra.mxu0 0.0
      %739 = vmatpush.msra.mxu0 0.0
      %740 = vmatpush.msra.mxu0 0.0
      %741 = vmatpush.msra.mxu0 0.0
      %742 = vmatpush.msra.mxu0 0.0
      %743 = vmatpush.msra.mxu0 0.0
      %744 = vmatpush.msra.mxu0 0.0
      %745 = vmatpush.msra.mxu0 0.0
      %746 = vmatpush.msra.mxu0 0.0
      %747 = vmatpush.msra.mxu0 0.0
      %v748 = vand.u32 %v607, 4294901760
      %749 = vmatpush.msra.mxu0 %v748
      %v750 = vand.u32 %v277, 4294901760
      %751 = vmatmul.f32.gmra.mxu0 %v750
      %v752 = vpop.f32.mrf.mxu0
      %v753 = vadd.f32 %v731, %v752
      %754 = vdwg.mxu0
      %v755 = vmul.f32 %v753, %v753
      %v756 = vadd.f32 %v592, %v755
      %v757 = vrsqrt.pop %v756
      %v758 = vmul.f32 %v757, %v756
      %v759 = vmul.f32 %v758, %v757
      %v760 = vmul.f32 0.5, %v759
      %v761 = vsub.f32 1.5, %v760
      %v762 = vmul.f32 %v757, %v761
      %v763 = vmul.f32 %v756, %v762
      %vm764 = vcmp.eq.f32.partialorder %v756, inf
      %v765 = vsel %vm764, %v756, %v763
      %vm766 = vcmp.eq.f32.partialorder %v756, 0.0
      %v767 = vand.u32 %v756, 2147483648
      %v768 = vsel %vm766, %v767, %v765
      %v769 = vadd.f32 %v768, 1e-08
      %v770 = vld [vmem:[%s3] sm:$0xff]
      %v771 = vld [vmem:[%s4] sm:$0xff]
      %v772 = vrcp.pop %v769
      %v773 = vmul.f32 %v769, %v772
      %v774 = vsub.f32 1.0, %v773
      %v775 = vmul.f32 %v772, %v774
      %v776 = vadd.f32 %v772, %v775
      %vm777 = vweird.f32 %v769
      %vm778 = vweird.f32 %v772
      %vm779 = vmor %vm777, %vm778
      %v780 = vsel %vm779, %v772, %v776
      %v781 = vand.u32 2147483647, %v769
      %vm782 = vcmp.eq.f32.partialorder %v781, 8.507059e+37
      %v783 = vand.u32 %v769, 2147483648
      %v784 = vor.u32 1.1754944e-38, %v783
      %v785 = vsel %vm782, %v784, %v780
      %787 = vset.pattern.permute.xlu0 0
      %788 = vperm.xlu0 %787, %v771
      %v789 = vpop.permute.xlu0 %788
      %v791 = vmul.f32 %v789, %v785
      %793 = vset.pattern.permute.xlu0 0
      %794 = vperm.xlu0 %793, %v770
      %v795 = vpop.permute.xlu0 %794
      %v797 = vadd.f32 %v795, %v791
      %v798 = vmul.f32 %v426, %v797
      %v799 = vmul.f32 %v589, %v797
      %v800 = vmul.f32 %v753, %v797
      %vm801 = vcmask 64512
      %v803 = vsel %vm801, %v257, 0
      %805 = vmatpush.msra.mxu0 0.0
      %806 = vmatpush.msra.mxu0 0.0
      %807 = vmatpush.msra.mxu0 0.0
      %808 = vmatpush.msra.mxu0 0.0
      %809 = vmatpush.msra.mxu0 0.0
      %810 = vmatpush.msra.mxu0 0.0
      %811 = vmatpush.msra.mxu0 0.0
      %812 = vmatpush.msra.mxu0 0.0
      %813 = vmatpush.msra.mxu0 0.0
      %814 = vmatpush.msra.mxu0 0.0
      %815 = vmatpush.msra.mxu0 0.0
      %816 = vmatpush.msra.mxu0 0.0
      %817 = vmatpush.msra.mxu0 0.0
      %818 = vmatpush.msra.mxu0 0.0
      %819 = vmatpush.msra.mxu0 0.0
      %v820 = vand.u32 %v798, 4294901760
      %821 = vmatpush.msra.mxu0 %v820
      %v822 = vand.u32 %v803, 4294901760
      %v823 = vsub.f32 %v803, %v822
      %v824 = vand.u32 %v823, 4294901760
      %v825 = vsub.f32 %v823, %v824
      %v826 = vand.u32 %v825, 4294901760
      %827 = vmatmul.f32.gmra.mxu0 %v826
      %v828 = vpop.f32.mrf.mxu0
      %v829 = vadd.f32 0.0, %v828
      %830 = vdwg.mxu0
      %831 = vmatpush.msra.mxu0 0.0
      %832 = vmatpush.msra.mxu0 0.0
      %833 = vmatpush.msra.mxu0 0.0
      %834 = vmatpush.msra.mxu0 0.0
      %835 = vmatpush.msra.mxu0 0.0
      %836 = vmatpush.msra.mxu0 0.0
      %837 = vmatpush.msra.mxu0 0.0
      %838 = vmatpush.msra.mxu0 0.0
      %839 = vmatpush.msra.mxu0 0.0
      %840 = vmatpush.msra.mxu0 0.0
      %841 = vmatpush.msra.mxu0 0.0
      %842 = vmatpush.msra.mxu0 0.0
      %843 = vmatpush.msra.mxu0 0.0
      %844 = vmatpush.msra.mxu0 0.0
      %845 = vmatpush.msra.mxu0 0.0
      %v846 = vand.u32 %v798, 4294901760
      %v847 = vsub.f32 %v798, %v846
      %v848 = vand.u32 %v847, 4294901760
      %v849 = vsub.f32 %v847, %v848
      %v850 = vand.u32 %v849, 4294901760
      %851 = vmatpush.msra.mxu0 %v850
      %v852 = vand.u32 %v803, 4294901760
      %853 = vmatmul.f32.gmra.mxu0 %v852
      %v854 = vpop.f32.mrf.mxu0
      %v855 = vadd.f32 %v829, %v854
      %856 = vdwg.mxu0
      %857 = vmatpush.msra.mxu0 0.0
      %858 = vmatpush.msra.mxu0 0.0
      %859 = vmatpush.msra.mxu0 0.0
      %860 = vmatpush.msra.mxu0 0.0
      %861 = vmatpush.msra.mxu0 0.0
      %862 = vmatpush.msra.mxu0 0.0
      %863 = vmatpush.msra.mxu0 0.0
      %864 = vmatpush.msra.mxu0 0.0
      %865 = vmatpush.msra.mxu0 0.0
      %866 = vmatpush.msra.mxu0 0.0
      %867 = vmatpush.msra.mxu0 0.0
      %868 = vmatpush.msra.mxu0 0.0
      %869 = vmatpush.msra.mxu0 0.0
      %870 = vmatpush.msra.mxu0 0.0
      %871 = vmatpush.msra.mxu0 0.0
      %v872 = vand.u32 %v798, 4294901760
      %v873 = vsub.f32 %v798, %v872
      %874 = vmatpush.msra.mxu0 %v873
      %v875 = vand.u32 %v803, 4294901760
      %v876 = vsub.f32 %v803, %v875
      %877 = vmatmul.f32.gmra.mxu0 %v876
      %v878 = vpop.f32.mrf.mxu0
      %v879 = vadd.f32 %v855, %v878
      %880 = vdwg.mxu0
      %881 = vmatpush.msra.mxu0 0.0
      %882 = vmatpush.msra.mxu0 0.0
      %883 = vmatpush.msra.mxu0 0.0
      %884 = vmatpush.msra.mxu0 0.0
      %885 = vmatpush.msra.mxu0 0.0
      %886 = vmatpush.msra.mxu0 0.0
      %887 = vmatpush.msra.mxu0 0.0
      %888 = vmatpush.msra.mxu0 0.0
      %889 = vmatpush.msra.mxu0 0.0
      %890 = vmatpush.msra.mxu0 0.0
      %891 = vmatpush.msra.mxu0 0.0
      %892 = vmatpush.msra.mxu0 0.0
      %893 = vmatpush.msra.mxu0 0.0
      %894 = vmatpush.msra.mxu0 0.0
      %895 = vmatpush.msra.mxu0 0.0
      %v896 = vand.u32 %v798, 4294901760
      %897 = vmatpush.msra.mxu0 %v896
      %v898 = vand.u32 %v803, 4294901760
      %v899 = vsub.f32 %v803, %v898
      %v900 = vand.u32 %v899, 4294901760
      %901 = vmatmul.f32.gmra.mxu0 %v900
      %v902 = vpop.f32.mrf.mxu0
      %v903 = vadd.f32 %v879, %v902
      %904 = vdwg.mxu0
      %905 = vmatpush.msra.mxu0 0.0
      %906 = vmatpush.msra.mxu0 0.0
      %907 = vmatpush.msra.mxu0 0.0
      %908 = vmatpush.msra.mxu0 0.0
      %909 = vmatpush.msra.mxu0 0.0
      %910 = vmatpush.msra.mxu0 0.0
      %911 = vmatpush.msra.mxu0 0.0
      %912 = vmatpush.msra.mxu0 0.0
      %913 = vmatpush.msra.mxu0 0.0
      %914 = vmatpush.msra.mxu0 0.0
      %915 = vmatpush.msra.mxu0 0.0
      %916 = vmatpush.msra.mxu0 0.0
      %917 = vmatpush.msra.mxu0 0.0
      %918 = vmatpush.msra.mxu0 0.0
      %919 = vmatpush.msra.mxu0 0.0
      %v920 = vand.u32 %v798, 4294901760
      %v921 = vsub.f32 %v798, %v920
      %v922 = vand.u32 %v921, 4294901760
      %923 = vmatpush.msra.mxu0 %v922
      %v924 = vand.u32 %v803, 4294901760
      %925 = vmatmul.f32.gmra.mxu0 %v924
      %v926 = vpop.f32.mrf.mxu0
      %v927 = vadd.f32 %v903, %v926
      %928 = vdwg.mxu0
      %929 = vmatpush.msra.mxu0 0.0
      %930 = vmatpush.msra.mxu0 0.0
      %931 = vmatpush.msra.mxu0 0.0
      %932 = vmatpush.msra.mxu0 0.0
      %933 = vmatpush.msra.mxu0 0.0
      %934 = vmatpush.msra.mxu0 0.0
      %935 = vmatpush.msra.mxu0 0.0
      %936 = vmatpush.msra.mxu0 0.0
      %937 = vmatpush.msra.mxu0 0.0
      %938 = vmatpush.msra.mxu0 0.0
      %939 = vmatpush.msra.mxu0 0.0
      %940 = vmatpush.msra.mxu0 0.0
      %941 = vmatpush.msra.mxu0 0.0
      %942 = vmatpush.msra.mxu0 0.0
      %943 = vmatpush.msra.mxu0 0.0
      %v944 = vand.u32 %v798, 4294901760
      %945 = vmatpush.msra.mxu0 %v944
      %v946 = vand.u32 %v803, 4294901760
      %947 = vmatmul.f32.gmra.mxu0 %v946
      %v948 = vpop.f32.mrf.mxu0
      %v949 = vadd.f32 %v927, %v948
      %950 = vdwg.mxu0
      %951 = vmatpush.msra.mxu0 0.0
      %952 = vmatpush.msra.mxu0 0.0
      %953 = vmatpush.msra.mxu0 0.0
      %954 = vmatpush.msra.mxu0 0.0
      %955 = vmatpush.msra.mxu0 0.0
      %956 = vmatpush.msra.mxu0 0.0
      %957 = vmatpush.msra.mxu0 0.0
      %958 = vmatpush.msra.mxu0 0.0
      %959 = vmatpush.msra.mxu0 0.0
      %960 = vmatpush.msra.mxu0 0.0
      %961 = vmatpush.msra.mxu0 0.0
      %962 = vmatpush.msra.mxu0 0.0
      %963 = vmatpush.msra.mxu0 0.0
      %964 = vmatpush.msra.mxu0 0.0
      %965 = vmatpush.msra.mxu0 0.0
      %v966 = vand.u32 %v799, 4294901760
      %967 = vmatpush.msra.mxu0 %v966
      %v968 = vand.u32 %v803, 4294901760
      %v969 = vsub.f32 %v803, %v968
      %v970 = vand.u32 %v969, 4294901760
      %v971 = vsub.f32 %v969, %v970
      %v972 = vand.u32 %v971, 4294901760
      %973 = vmatmul.f32.gmra.mxu0 %v972
      %v974 = vpop.f32.mrf.mxu0
      %v975 = vadd.f32 0.0, %v974
      %976 = vdwg.mxu0
      %977 = vmatpush.msra.mxu0 0.0
      %978 = vmatpush.msra.mxu0 0.0
      %979 = vmatpush.msra.mxu0 0.0
      %980 = vmatpush.msra.mxu0 0.0
      %981 = vmatpush.msra.mxu0 0.0
      %982 = vmatpush.msra.mxu0 0.0
      %983 = vmatpush.msra.mxu0 0.0
      %984 = vmatpush.msra.mxu0 0.0
      %985 = vmatpush.msra.mxu0 0.0
      %986 = vmatpush.msra.mxu0 0.0
      %987 = vmatpush.msra.mxu0 0.0
      %988 = vmatpush.msra.mxu0 0.0
      %989 = vmatpush.msra.mxu0 0.0
      %990 = vmatpush.msra.mxu0 0.0
      %991 = vmatpush.msra.mxu0 0.0
      %v992 = vand.u32 %v799, 4294901760
      %v993 = vsub.f32 %v799, %v992
      %v994 = vand.u32 %v993, 4294901760
      %v995 = vsub.f32 %v993, %v994
      %v996 = vand.u32 %v995, 4294901760
      %997 = vmatpush.msra.mxu0 %v996
      %v998 = vand.u32 %v803, 4294901760
      %999 = vmatmul.f32.gmra.mxu0 %v998
      %v1000 = vpop.f32.mrf.mxu0
      %v1001 = vadd.f32 %v975, %v1000
      %1002 = vdwg.mxu0
      %1003 = vmatpush.msra.mxu0 0.0
      %1004 = vmatpush.msra.mxu0 0.0
      %1005 = vmatpush.msra.mxu0 0.0
      %1006 = vmatpush.msra.mxu0 0.0
      %1007 = vmatpush.msra.mxu0 0.0
      %1008 = vmatpush.msra.mxu0 0.0
      %1009 = vmatpush.msra.mxu0 0.0
      %1010 = vmatpush.msra.mxu0 0.0
      %1011 = vmatpush.msra.mxu0 0.0
      %1012 = vmatpush.msra.mxu0 0.0
      %1013 = vmatpush.msra.mxu0 0.0
      %1014 = vmatpush.msra.mxu0 0.0
      %1015 = vmatpush.msra.mxu0 0.0
      %1016 = vmatpush.msra.mxu0 0.0
      %1017 = vmatpush.msra.mxu0 0.0
      %v1018 = vand.u32 %v799, 4294901760
      %v1019 = vsub.f32 %v799, %v1018
      %1020 = vmatpush.msra.mxu0 %v1019
      %v1021 = vand.u32 %v803, 4294901760
      %v1022 = vsub.f32 %v803, %v1021
      %1023 = vmatmul.f32.gmra.mxu0 %v1022
      %v1024 = vpop.f32.mrf.mxu0
      %v1025 = vadd.f32 %v1001, %v1024
      %1026 = vdwg.mxu0
      %1027 = vmatpush.msra.mxu0 0.0
      %1028 = vmatpush.msra.mxu0 0.0
      %1029 = vmatpush.msra.mxu0 0.0
      %1030 = vmatpush.msra.mxu0 0.0
      %1031 = vmatpush.msra.mxu0 0.0
      %1032 = vmatpush.msra.mxu0 0.0
      %1033 = vmatpush.msra.mxu0 0.0
      %1034 = vmatpush.msra.mxu0 0.0
      %1035 = vmatpush.msra.mxu0 0.0
      %1036 = vmatpush.msra.mxu0 0.0
      %1037 = vmatpush.msra.mxu0 0.0
      %1038 = vmatpush.msra.mxu0 0.0
      %1039 = vmatpush.msra.mxu0 0.0
      %1040 = vmatpush.msra.mxu0 0.0
      %1041 = vmatpush.msra.mxu0 0.0
      %v1042 = vand.u32 %v799, 4294901760
      %1043 = vmatpush.msra.mxu0 %v1042
      %v1044 = vand.u32 %v803, 4294901760
      %v1045 = vsub.f32 %v803, %v1044
      %v1046 = vand.u32 %v1045, 4294901760
      %1047 = vmatmul.f32.gmra.mxu0 %v1046
      %v1048 = vpop.f32.mrf.mxu0
      %v1049 = vadd.f32 %v1025, %v1048
      %1050 = vdwg.mxu0
      %1051 = vmatpush.msra.mxu0 0.0
      %1052 = vmatpush.msra.mxu0 0.0
      %1053 = vmatpush.msra.mxu0 0.0
      %1054 = vmatpush.msra.mxu0 0.0
      %1055 = vmatpush.msra.mxu0 0.0
      %1056 = vmatpush.msra.mxu0 0.0
      %1057 = vmatpush.msra.mxu0 0.0
      %1058 = vmatpush.msra.mxu0 0.0
      %1059 = vmatpush.msra.mxu0 0.0
      %1060 = vmatpush.msra.mxu0 0.0
      %1061 = vmatpush.msra.mxu0 0.0
      %1062 = vmatpush.msra.mxu0 0.0
      %1063 = vmatpush.msra.mxu0 0.0
      %1064 = vmatpush.msra.mxu0 0.0
      %1065 = vmatpush.msra.mxu0 0.0
      %v1066 = vand.u32 %v799, 4294901760
      %v1067 = vsub.f32 %v799, %v1066
      %v1068 = vand.u32 %v1067, 4294901760
      %1069 = vmatpush.msra.mxu0 %v1068
      %v1070 = vand.u32 %v803, 4294901760
      %1071 = vmatmul.f32.gmra.mxu0 %v1070
      %v1072 = vpop.f32.mrf.mxu0
      %v1073 = vadd.f32 %v1049, %v1072
      %1074 = vdwg.mxu0
      %1075 = vmatpush.msra.mxu0 0.0
      %1076 = vmatpush.msra.mxu0 0.0
      %1077 = vmatpush.msra.mxu0 0.0
      %1078 = vmatpush.msra.mxu0 0.0
      %1079 = vmatpush.msra.mxu0 0.0
      %1080 = vmatpush.msra.mxu0 0.0
      %1081 = vmatpush.msra.mxu0 0.0
      %1082 = vmatpush.msra.mxu0 0.0
      %1083 = vmatpush.msra.mxu0 0.0
      %1084 = vmatpush.msra.mxu0 0.0
      %1085 = vmatpush.msra.mxu0 0.0
      %1086 = vmatpush.msra.mxu0 0.0
      %1087 = vmatpush.msra.mxu0 0.0
      %1088 = vmatpush.msra.mxu0 0.0
      %1089 = vmatpush.msra.mxu0 0.0
      %v1090 = vand.u32 %v799, 4294901760
      %1091 = vmatpush.msra.mxu0 %v1090
      %v1092 = vand.u32 %v803, 4294901760
      %1093 = vmatmul.f32.gmra.mxu0 %v1092
      %v1094 = vpop.f32.mrf.mxu0
      %v1095 = vadd.f32 %v1073, %v1094
      %1096 = vdwg.mxu0
      %1097 = vmatpush.msra.mxu0 0.0
      %1098 = vmatpush.msra.mxu0 0.0
      %1099 = vmatpush.msra.mxu0 0.0
      %1100 = vmatpush.msra.mxu0 0.0
      %1101 = vmatpush.msra.mxu0 0.0
      %1102 = vmatpush.msra.mxu0 0.0
      %1103 = vmatpush.msra.mxu0 0.0
      %1104 = vmatpush.msra.mxu0 0.0
      %1105 = vmatpush.msra.mxu0 0.0
      %1106 = vmatpush.msra.mxu0 0.0
      %1107 = vmatpush.msra.mxu0 0.0
      %1108 = vmatpush.msra.mxu0 0.0
      %1109 = vmatpush.msra.mxu0 0.0
      %1110 = vmatpush.msra.mxu0 0.0
      %1111 = vmatpush.msra.mxu0 0.0
      %v1112 = vand.u32 %v800, 4294901760
      %1113 = vmatpush.msra.mxu0 %v1112
      %v1114 = vand.u32 %v803, 4294901760
      %v1115 = vsub.f32 %v803, %v1114
      %v1116 = vand.u32 %v1115, 4294901760
      %v1117 = vsub.f32 %v1115, %v1116
      %v1118 = vand.u32 %v1117, 4294901760
      %1119 = vmatmul.f32.gmra.mxu0 %v1118
      %v1120 = vpop.f32.mrf.mxu0
      %v1121 = vadd.f32 0.0, %v1120
      %1122 = vdwg.mxu0
      %1123 = vmatpush.msra.mxu0 0.0
      %1124 = vmatpush.msra.mxu0 0.0
      %1125 = vmatpush.msra.mxu0 0.0
      %1126 = vmatpush.msra.mxu0 0.0
      %1127 = vmatpush.msra.mxu0 0.0
      %1128 = vmatpush.msra.mxu0 0.0
      %1129 = vmatpush.msra.mxu0 0.0
      %1130 = vmatpush.msra.mxu0 0.0
      %1131 = vmatpush.msra.mxu0 0.0
      %1132 = vmatpush.msra.mxu0 0.0
      %1133 = vmatpush.msra.mxu0 0.0
      %1134 = vmatpush.msra.mxu0 0.0
      %1135 = vmatpush.msra.mxu0 0.0
      %1136 = vmatpush.msra.mxu0 0.0
      %1137 = vmatpush.msra.mxu0 0.0
      %v1138 = vand.u32 %v800, 4294901760
      %v1139 = vsub.f32 %v800, %v1138
      %v1140 = vand.u32 %v1139, 4294901760
      %v1141 = vsub.f32 %v1139, %v1140
      %v1142 = vand.u32 %v1141, 4294901760
      %1143 = vmatpush.msra.mxu0 %v1142
      %v1144 = vand.u32 %v803, 4294901760
      %1145 = vmatmul.f32.gmra.mxu0 %v1144
      %v1146 = vpop.f32.mrf.mxu0
      %v1147 = vadd.f32 %v1121, %v1146
      %1148 = vdwg.mxu0
      %1149 = vmatpush.msra.mxu0 0.0
      %1150 = vmatpush.msra.mxu0 0.0
      %1151 = vmatpush.msra.mxu0 0.0
      %1152 = vmatpush.msra.mxu0 0.0
      %1153 = vmatpush.msra.mxu0 0.0
      %1154 = vmatpush.msra.mxu0 0.0
      %1155 = vmatpush.msra.mxu0 0.0
      %1156 = vmatpush.msra.mxu0 0.0
      %1157 = vmatpush.msra.mxu0 0.0
      %1158 = vmatpush.msra.mxu0 0.0
      %1159 = vmatpush.msra.mxu0 0.0
      %1160 = vmatpush.msra.mxu0 0.0
      %1161 = vmatpush.msra.mxu0 0.0
      %1162 = vmatpush.msra.mxu0 0.0
      %1163 = vmatpush.msra.mxu0 0.0
      %v1164 = vand.u32 %v800, 4294901760
      %v1165 = vsub.f32 %v800, %v1164
      %1166 = vmatpush.msra.mxu0 %v1165
      %v1167 = vand.u32 %v803, 4294901760
      %v1168 = vsub.f32 %v803, %v1167
      %1169 = vmatmul.f32.gmra.mxu0 %v1168
      %v1170 = vpop.f32.mrf.mxu0
      %v1171 = vadd.f32 %v1147, %v1170
      %1172 = vdwg.mxu0
      %1173 = vmatpush.msra.mxu0 0.0
      %1174 = vmatpush.msra.mxu0 0.0
      %1175 = vmatpush.msra.mxu0 0.0
      %1176 = vmatpush.msra.mxu0 0.0
      %1177 = vmatpush.msra.mxu0 0.0
      %1178 = vmatpush.msra.mxu0 0.0
      %1179 = vmatpush.msra.mxu0 0.0
      %1180 = vmatpush.msra.mxu0 0.0
      %1181 = vmatpush.msra.mxu0 0.0
      %1182 = vmatpush.msra.mxu0 0.0
      %1183 = vmatpush.msra.mxu0 0.0
      %1184 = vmatpush.msra.mxu0 0.0
      %1185 = vmatpush.msra.mxu0 0.0
      %1186 = vmatpush.msra.mxu0 0.0
      %1187 = vmatpush.msra.mxu0 0.0
      %v1188 = vand.u32 %v800, 4294901760
      %1189 = vmatpush.msra.mxu0 %v1188
      %v1190 = vand.u32 %v803, 4294901760
      %v1191 = vsub.f32 %v803, %v1190
      %v1192 = vand.u32 %v1191, 4294901760
      %1193 = vmatmul.f32.gmra.mxu0 %v1192
      %v1194 = vpop.f32.mrf.mxu0
      %v1195 = vadd.f32 %v1171, %v1194
      %1196 = vdwg.mxu0
      %1197 = vmatpush.msra.mxu0 0.0
      %1198 = vmatpush.msra.mxu0 0.0
      %1199 = vmatpush.msra.mxu0 0.0
      %1200 = vmatpush.msra.mxu0 0.0
      %1201 = vmatpush.msra.mxu0 0.0
      %1202 = vmatpush.msra.mxu0 0.0
      %1203 = vmatpush.msra.mxu0 0.0
      %1204 = vmatpush.msra.mxu0 0.0
      %1205 = vmatpush.msra.mxu0 0.0
      %1206 = vmatpush.msra.mxu0 0.0
      %1207 = vmatpush.msra.mxu0 0.0
      %1208 = vmatpush.msra.mxu0 0.0
      %1209 = vmatpush.msra.mxu0 0.0
      %1210 = vmatpush.msra.mxu0 0.0
      %1211 = vmatpush.msra.mxu0 0.0
      %v1212 = vand.u32 %v800, 4294901760
      %v1213 = vsub.f32 %v800, %v1212
      %v1214 = vand.u32 %v1213, 4294901760
      %1215 = vmatpush.msra.mxu0 %v1214
      %v1216 = vand.u32 %v803, 4294901760
      %1217 = vmatmul.f32.gmra.mxu0 %v1216
      %v1218 = vpop.f32.mrf.mxu0
      %v1219 = vadd.f32 %v1195, %v1218
      %1220 = vdwg.mxu0
      %1221 = vmatpush.msra.mxu0 0.0
      %1222 = vmatpush.msra.mxu0 0.0
      %1223 = vmatpush.msra.mxu0 0.0
      %1224 = vmatpush.msra.mxu0 0.0
      %1225 = vmatpush.msra.mxu0 0.0
      %1226 = vmatpush.msra.mxu0 0.0
      %1227 = vmatpush.msra.mxu0 0.0
      %1228 = vmatpush.msra.mxu0 0.0
      %1229 = vmatpush.msra.mxu0 0.0
      %1230 = vmatpush.msra.mxu0 0.0
      %1231 = vmatpush.msra.mxu0 0.0
      %1232 = vmatpush.msra.mxu0 0.0
      %1233 = vmatpush.msra.mxu0 0.0
      %1234 = vmatpush.msra.mxu0 0.0
      %1235 = vmatpush.msra.mxu0 0.0
      %v1236 = vand.u32 %v800, 4294901760
      %1237 = vmatpush.msra.mxu0 %v1236
      %v1238 = vand.u32 %v803, 4294901760
      %1239 = vmatmul.f32.gmra.mxu0 %v1238
      %v1240 = vpop.f32.mrf.mxu0
      %v1241 = vadd.f32 %v1219, %v1240
      %1242 = vdwg.mxu0
      %v1243 = vmul.f32 %v798, %v949
      %v1244 = vmul.f32 %v799, %v1095
      %v1245 = vadd.f32 %v1243, %v1244
      %v1246 = vmul.f32 %v800, %v1241
      %v1247 = vadd.f32 %v1245, %v1246
      %v1248 = vmul.f32 %v949, %v949
      %v1249 = vmul.f32 %v1095, %v1095
      %v1250 = vadd.f32 %v1248, %v1249
      %v1251 = vmul.f32 %v1241, %v1241
      %v1252 = vadd.f32 %v1250, %v1251
      %vm1253 = vcmp.lt.f32.partialorder %v1247, 0.0
      %v1254 = vadd.f32 %v1252, 1e-08
      %v1255 = vrcp.pop %v1254
      %v1256 = vmul.f32 %v1254, %v1255
      %v1257 = vsub.f32 1.0, %v1256
      %v1258 = vmul.f32 %v1255, %v1257
      %v1259 = vadd.f32 %v1255, %v1258
      %vm1260 = vweird.f32 %v1254
      %vm1261 = vweird.f32 %v1255
      %vm1262 = vmor %vm1260, %vm1261
      %v1263 = vsel %vm1262, %v1255, %v1259
      %v1264 = vand.u32 2147483647, %v1254
      %vm1265 = vcmp.eq.f32.partialorder %v1264, 8.507059e+37
      %v1266 = vand.u32 %v1254, 2147483648
      %v1267 = vor.u32 1.1754944e-38, %v1266
      %v1268 = vsel %vm1265, %v1267, %v1263
      %v1269 = vmul.f32 %v1247, %v1268
      %v1270 = vsel %vm1253, %v1269, 0.0
      %v1271 = vmul.f32 %v1270, 0.8
      %v1272 = vmul.f32 %v1271, %v949
      %v1273 = vsub.f32 %v798, %v1272
      %v1275 = vrot.slane %v1273, 1
      %v1276 = vrot.slane %v1273, 2
      %v1277 = vrot.slane %v1273, 3
      %v1278 = vrot.slane %v1273, 4
      %v1279 = vrot.slane %v1273, 5
      %v1280 = vrot.slane %v1273, 6
      %v1281 = vrot.slane %v1273, 7
      %vm1289 = vcmask 122880
      %1290 = vst.msk [vmem:[%s255] sm:$0x1] %vm1289, %v1273
      %1291 = vst.msk [vmem:[%s255 + $0x4] sm:$0x1] %vm1289, %v1275
      %1292 = vst.msk [vmem:[%s255 + $0x8] sm:$0x1] %vm1289, %v1276
      %1293 = vst.msk [vmem:[%s255 + $0xc] sm:$0x1] %vm1289, %v1277
      %1294 = vst.msk [vmem:[%s255 + $0x10] sm:$0x1] %vm1289, %v1278
      %1295 = vst.msk [vmem:[%s255 + $0x14] sm:$0x1] %vm1289, %v1279
      %1296 = vst.msk [vmem:[%s255 + $0x18] sm:$0x1] %vm1289, %v1280
      %1297 = vst.msk [vmem:[%s255 + $0x1c] sm:$0x1] %vm1289, %v1281
      %v1298 = vmul.f32 %v1271, %v1095
      %v1299 = vsub.f32 %v799, %v1298
      %v1301 = vrot.slane %v1299, 1
      %v1302 = vrot.slane %v1299, 2
      %v1303 = vrot.slane %v1299, 3
      %v1304 = vrot.slane %v1299, 4
      %v1305 = vrot.slane %v1299, 5
      %v1306 = vrot.slane %v1299, 6
      %v1307 = vrot.slane %v1299, 7
      %1315 = vst.msk [vmem:[%s255 + $0x1] sm:$0x1] %vm1289, %v1299
      %1316 = vst.msk [vmem:[%s255 + $0x5] sm:$0x1] %vm1289, %v1301
      %1317 = vst.msk [vmem:[%s255 + $0x9] sm:$0x1] %vm1289, %v1302
      %1318 = vst.msk [vmem:[%s255 + $0xd] sm:$0x1] %vm1289, %v1303
      %1319 = vst.msk [vmem:[%s255 + $0x11] sm:$0x1] %vm1289, %v1304
      %1320 = vst.msk [vmem:[%s255 + $0x15] sm:$0x1] %vm1289, %v1305
      %1321 = vst.msk [vmem:[%s255 + $0x19] sm:$0x1] %vm1289, %v1306
      %1322 = vst.msk [vmem:[%s255 + $0x1d] sm:$0x1] %vm1289, %v1307
      %v1323 = vmul.f32 %v1271, %v1241
      %v1324 = vsub.f32 %v800, %v1323
      %v1326 = vrot.slane %v1324, 1
      %v1327 = vrot.slane %v1324, 2
      %v1328 = vrot.slane %v1324, 3
      %v1329 = vrot.slane %v1324, 4
      %v1330 = vrot.slane %v1324, 5
      %v1331 = vrot.slane %v1324, 6
      %v1332 = vrot.slane %v1324, 7
      %1340 = vst.msk [vmem:[%s255 + $0x2] sm:$0x1] %vm1289, %v1324
      %1341 = vst.msk [vmem:[%s255 + $0x6] sm:$0x1] %vm1289, %v1326
      %1342 = vst.msk [vmem:[%s255 + $0xa] sm:$0x1] %vm1289, %v1327
      %1343 = vst.msk [vmem:[%s255 + $0xe] sm:$0x1] %vm1289, %v1328
      %1344 = vst.msk [vmem:[%s255 + $0x12] sm:$0x1] %vm1289, %v1329
      %1345 = vst.msk [vmem:[%s255 + $0x16] sm:$0x1] %vm1289, %v1330
      %1346 = vst.msk [vmem:[%s255 + $0x1a] sm:$0x1] %vm1289, %v1331
      %1347 = vst.msk [vmem:[%s255 + $0x1e] sm:$0x1] %vm1289, %v1332
      %p1348 = scmp.lt.s32.totalorder %s20, 1
      %s1349 = scalar_select %p1348, %s20, 1
      %p1350 = scmp.lt.s32.totalorder %s21, 0
      %s1351 = scalar_select %p1350, %s21, 0
      %s1352 = smul.addr %s1349, 8
      %s1353 = sadd.s32 %s1351, %s1352
      %s1354 = smul.addr %s1353, 4
      %s1355 = scalar_lea.vmem %s5, %s1354
      // Predicated region
      $region41: #{vn_linear_and_leaky_relu.3} parent=39 // pred_check
        %p1356 = pneg %p160
      $region42: #{vn_linear_and_leaky_relu.3} parent=39 // pred_check_branch
        %1358 = sbr.rel (%p1356) target = $region44
      $region43: #{vn_linear_and_leaky_relu.3} parent=39 // pred_region
        _
      $region44: #{vn_linear_and_leaky_relu.3} parent=39 // pred_fallthru
        _
    $region40: #{vn_linear_and_leaky_relu.3} parent=5 // pred_fallthru
      _
    %p1359 = scmp.le.s32.totalorder 2, %s11
    // Predicated region
    $region45: #{vn_linear_and_leaky_relu.3} parent=5 // pred_check
      %p1360 = pneg %p1359
    $region46: #{vn_linear_and_leaky_relu.3} parent=5 // pred_check_branch
      %1362 = sbr.rel (%p1360) target = $region48
    $region47: #{vn_linear_and_leaky_relu.3} parent=5 // pred_region
      %s1363 = ssub.s32 %s11, 2
      // Predicated region
      $region49: #{vn_linear_and_leaky_relu.3} parent=47 // pred_check
        %p1364 = pneg %p166
      $region50: #{vn_linear_and_leaky_relu.3} parent=47 // pred_check_branch
        %1366 = sbr.rel (%p1364) target = $region52
      $region51: #{vn_linear_and_leaky_relu.3} parent=47 // pred_region
        %p1367 = scmp.lt.s32.totalorder %s22, 1
        %s1368 = scalar_select %p1367, %s22, 1
        %p1369 = scmp.lt.s32.totalorder %s23, 0
        %s1370 = scalar_select %p1369, %s23, 0
        %s1371 = smul.addr %s1368, 8
        %s1372 = sadd.s32 %s1370, %s1371
        %s1373 = smul.addr %s1372, 4
        %s1374 = scalar_lea.vmem %s5, %s1373
      $region52: #{vn_linear_and_leaky_relu.3} parent=47 // pred_fallthru
        _
    $region48: #{vn_linear_and_leaky_relu.3} parent=5 // pred_fallthru
      _
  $region6: #{vn_linear_and_leaky_relu.3} parent=0 // loop_footer
    %s15 = sadd.s32 1, %s11
  $region7: #{vn_linear_and_leaky_relu.3} parent=0 // loop_footer_branch
    %10 = sbr.rel target = $region3
  $region8: #{vn_linear_and_leaky_relu.3} parent=0 // loop_exit
    _

</llo_original>
